<compile_context>
chip_gen: v7x
topology: tpu7x:2x2x1
jax: 0.10.0
libtpu: 0.0.40
codegen_flags: <defaults>
</compile_context>

<pallas_src>
import jax
import jax.numpy as jnp
from jax.experimental import pallas as pl
from jax.experimental.pallas import tpu as pltpu

# Large matmul operands (hoisted projections, MLP weights) use this dtype;
# recurrent state / recurrent weights and all accumulation stay f32.
MXU_DTYPE = jnp.bfloat16


# ----------------------------------------------------------------------------
# Kernels
# ----------------------------------------------------------------------------
def _gru_context_kernel(x_ref, len_ref, wih_ref, whh_ref, bih_ref, bhh_ref,
                        hn_ref, gi_ref):
    # x_ref:   (T*Bp, 2D) f32 time-major (row = t*Bp + b)
    # len_ref: (Bp, 1)    f32 sequence lengths (0 for padded batch rows)
    # wih_ref: (2D, 3CH) bf16 ; whh_ref: (CH, 3CH) f32 (recurrent chain kept f32)
    # bih/bhh: (1, 3CH) f32 ; hn_ref: (Bp, CH)
    # gi_ref:  (T, Bp, 3CH) f32 scratch (hoisted input projection)
    T, Bp, G3 = gi_ref.shape
    CH = hn_ref.shape[1]

    # Hoisted input projection: ONE (T*Bp, 2D) x (2D, 3CH) MXU matmul.
    gi_all = (jnp.dot(x_ref[...].astype(wih_ref.dtype), wih_ref[...],
                      preferred_element_type=jnp.float32) + bih_ref[...])
    gi_ref[...] = gi_all.reshape(T, Bp, G3)

    lens = len_ref[...]                                   # (Bp, 1)
    h = jnp.zeros((Bp, CH), jnp.float32)
    hn = jnp.zeros((Bp, CH), jnp.float32)
    # Static unroll (T small & fixed); the serial chain is only the tiny h @ whh dot.
    # TODO(synk): switch to lax.fori_loop(..., unroll=k) once T grows large.
    for t in range(T):
        gi = gi_ref[t]                                    # (Bp, 3CH) tile-aligned load
        gh = jnp.dot(h, whh_ref[...],
                     preferred_element_type=jnp.float32) + bhh_ref[...]
        r = jax.nn.sigmoid(gi[:, :CH] + gh[:, :CH])
        z = jax.nn.sigmoid(gi[:, CH:2 * CH] + gh[:, CH:2 * CH])
        n = jnp.tanh(gi[:, 2 * CH:] + r * gh[:, 2 * CH:])
        h = (1.0 - z) * n + z * h
        pad = (jnp.float32(t + 1) <= lens).astype(jnp.float32)   # (Bp, 1)
        hn = pad * h + (1.0 - pad) * hn
    hn_ref[...] = hn


def _bilstm_impute_kernel(x_ref, h0_ref, c0_ref,
                          wih_ref, whh_ref, b_ref, wr_ref, br_ref,
                          out_ref, g_ref, h_seq):
    # x_ref: (T*Bp, In) f32 time-major ; h0/c0: (Bp, 2H) f32  [fwd H | bwd H]
    # wih: (In, 8H) bf16 [fwd 4H | bwd 4H]  (single fused fwd+bwd input projection)
    # whh: (2H, 8H) f32 block-diagonal [whh_f.T, 0; 0, whh_b.T]
    # b:   (1, 8H) f32 (bih + bhh per direction)
    # wr:  (2H, D) bf16 ; br: (1, D) f32 ; out_ref: (T*Bp, D) f32
    # scratches: g_ref (T, Bp, 8H) f32 gate pre-acts, h_seq (T, Bp, 2H) f32
    T, Bp, G8 = g_ref.shape
    H2 = h_seq.shape[2]
    H = H2 // 2
    G4 = G8 // 2

    # Hoisted fwd+bwd input projections fused into ONE (T*Bp, In) x (In, 8H) matmul.
    gates = (jnp.dot(x_ref[...].astype(wih_ref.dtype), wih_ref[...],
                     preferred_element_type=jnp.float32) + b_ref[...])
    g_ref[...] = gates.reshape(T, Bp, G8)

    def cell(g, c):                                       # PyTorch gate order i, f, g, o
        i = jax.nn.sigmoid(g[:, :H])
        f = jax.nn.sigmoid(g[:, H:2 * H])
        gg = jnp.tanh(g[:, 2 * H:3 * H])
        o = jax.nn.sigmoid(g[:, 3 * H:])
        c_new = f * c + i * gg
        return o * jnp.tanh(c_new), c_new

    hcat = h0_ref[...]                                    # (Bp, 2H) [fwd | bwd]
    c0 = c0_ref[...]
    cf = c0[:, :H]
    cb = c0[:, H:]
    h_seq[0, :, :H] = hcat[:, :H]
    h_seq[T - 1, :, H:] = hcat[:, H:]
    # TODO(synk): gate blocks start at H-lane offsets; a per-gate padded layout would
    # remove the per-step cross-lane selects.
    # TODO(synk): for very long T*B stream x / gates in T-chunks (pltpu.emit_pipeline)
    # to bound VMEM on v7x instead of keeping the whole sequence resident.
    for t in range(T - 1):
        # ONE fused fwd+bwd recurrent matmul per step (block-diagonal whh).
        gh = jnp.dot(hcat, whh_ref[...], preferred_element_type=jnp.float32)
        g_f = g_ref[t][:, :G4] + gh[:, :G4]
        g_b = g_ref[T - 1 - t][:, G4:] + gh[:, G4:]
        hf, cf = cell(g_f, cf)
        hb, cb = cell(g_b, cb)
        h_seq[t + 1, :, :H] = hf
        h_seq[T - 2 - t, :, H:] = hb
        hcat = jnp.concatenate([hf, hb], axis=1)

    # Single MXU-friendly output projection over the whole sequence.
    hs = h_seq[...].reshape(T * Bp, H2)
    out_ref[...] = (jnp.dot(hs.astype(wr_ref.dtype), wr_ref[...],
                            preferred_element_type=jnp.float32) + br_ref[...])


def _feat_fuse_kernel(x_ref, g_ref, m_ref, nv_ref, rnn_ref,
                      wbig_ref, bhid_ref, w1_ref, b1_ref, w2_ref, b2_ref,
                      wfg_ref, wfm_ref, bf_ref,
                      feat_ref, final_ref, rl_ref, fl_ref, ul_ref):
    # Lane-dense data tiles (features on sublanes, rows on lanes):
    #   x/g/m/nv/rnn/feat/final: (D, TN)
    # Weights (fully resident):
    #   wbig: (D*FH, D) bf16 ; bhid: (D*FH, 1) f32
    #   w1:   (D*FH, D*FH) bf16 = kron(I_D, fi_w1) ; b1: (D*FH, 1) f32
    #   w2:   (D, D*FH)   bf16 = kron(I_D, fi_w2) ; b2: (1, 1) f32
    #   wfg/wfm: (D, D) f32 ; bf: (D, 1) f32
    # rl/fl/ul: (1, 1) loss accumulators (same block across the whole grid).
    D = x_ref.shape[0]
    step = pl.program_id(0)

    @pl.when(step == 0)
    def _():
        rl_ref[...] = jnp.zeros_like(rl_ref)
        fl_ref[...] = jnp.zeros_like(fl_ref)
        ul_ref[...] = jnp.zeros_like(ul_ref)

    x = x_ref[...]
    # Per-feature MLP imputation as ONE matmul chain; feat assembled/stored once.
    h1 = jnp.maximum(
        jnp.dot(wbig_ref[...], x.astype(wbig_ref.dtype),
                preferred_element_type=jnp.float32) + bhid_ref[...], 0.0)
    h2 = jnp.maximum(
        jnp.dot(w1_ref[...], h1.astype(w1_ref.dtype),
                preferred_element_type=jnp.float32) + b1_ref[...], 0.0)
    feat = (jnp.dot(w2_ref[...], h2.astype(w2_ref.dtype),
                    preferred_element_type=jnp.float32) + b2_ref[...])
    feat_ref[...] = feat                                   # single lane-dense store

    g = g_ref[...]
    m = m_ref[...]
    nv = nv_ref[...]
    rnn = rnn_ref[...]
    # Fusion gate: tiny (D,D) contractions (MXU is idle anyway).
    beta = jax.nn.sigmoid(
        jnp.dot(wfg_ref[...], g, preferred_element_type=jnp.float32)
        + jnp.dot(wfm_ref[...], m, preferred_element_type=jnp.float32)
        + bf_ref[...])
    fusion = beta * feat + (1.0 - beta) * rnn
    final_ref[...] = m * nv + (1.0 - m) * fusion           # single lane-dense store

    # Fused masked MSE-sum losses: one lane reduction over stacked residuals.
    tgt = nv * m
    res = jnp.concatenate([rnn * m - tgt, feat * m - tgt, fusion * m - tgt], axis=0)
    ssq = jnp.sum(res * res, axis=1, keepdims=True)        # (3D, 1)
    rl_ref[...] += jnp.sum(ssq[0:D, :]).reshape(1, 1)
    fl_ref[...] += jnp.sum(ssq[D:2 * D, :]).reshape(1, 1)
    ul_ref[...] += jnp.sum(ssq[2 * D:3 * D, :]).reshape(1, 1)


# ----------------------------------------------------------------------------
# Wrappers around pallas_call
# ----------------------------------------------------------------------------
def _vmem_specs(n):
    return [pl.BlockSpec(memory_space=pltpu.MemorySpace.VMEM) for _ in range(n)]


def _full_spec(arr):
    nd = arr.ndim
    return pl.BlockSpec(arr.shape, lambda i: (0,) * nd)


def _pad_axis(x, target, axis):
    pad = target - x.shape[axis]
    if pad == 0:
        return x
    widths = [(0, 0)] * x.ndim
    widths[axis] = (0, pad)
    return jnp.pad(x, widths)


def gru_context(x_tm, lengths, wih_t, whh_t, bih, bhh):
    # x_tm: (T, B, 2D) time-major f32
    # TODO(synk): add a batch-chunk "parallel" grid axis to use both v7x TensorCores.
    T, B, I2 = x_tm.shape
    CH = whh_t.shape[0]
    Bp = ((B + 7) // 8) * 8                      # sublane-aligned batch
    x_tm = _pad_axis(x_tm, Bp, 1)
    lengths = _pad_axis(lengths, Bp, 0)
    hn = pl.pallas_call(
        _gru_context_kernel,
        out_shape=jax.ShapeDtypeStruct((Bp, CH), jnp.float32),
        in_specs=_vmem_specs(6),
        out_specs=pl.BlockSpec(memory_space=pltpu.MemorySpace.VMEM),
        scratch_shapes=[pltpu.VMEM((T, Bp, 3 * CH), jnp.float32)],
    )(x_tm.reshape(T * Bp, I2), lengths.reshape(Bp, 1), wih_t, whh_t, bih, bhh)
    return hn[:B]


def bilstm_impute(x_tm, h0, c0, wih_cat, whh_blk, b_cat, wr, br):
    # x_tm: (T, B, In) time-major; h0/c0: (B, 2H) [fwd | bwd]
    # TODO(synk): add a batch-chunk "parallel" grid axis to use both v7x TensorCores.
    T, B, In = x_tm.shape
    H2 = h0.shape[1]
    G8 = wih_cat.shape[1]
    D = wr.shape[1]
    Bp = ((B + 7) // 8) * 8
    x_tm = _pad_axis(x_tm, Bp, 1)
    h0 = _pad_axis(h0, Bp, 0)
    c0 = _pad_axis(c0, Bp, 0)
    out = pl.pallas_call(
        _bilstm_impute_kernel,
        out_shape=jax.ShapeDtypeStruct((T * Bp, D), jnp.float32),
        in_specs=_vmem_specs(8),
        out_specs=pl.BlockSpec(memory_space=pltpu.MemorySpace.VMEM),
        scratch_shapes=[
            pltpu.VMEM((T, Bp, G8), jnp.float32),   # hoisted fwd+bwd gate pre-acts
            pltpu.VMEM((T, Bp, H2), jnp.float32),   # fwd/bwd hidden sequence
        ],
    )(x_tm.reshape(T * Bp, In), h0, c0, wih_cat, whh_blk, b_cat, wr, br)
    return out.reshape(T, Bp, D)[:, :B, :]           # (T, B, D) time-major


def feat_fuse(x_t, g_t, m_t, nv_t, rnn_t,
              wbig, bhid, w1blk, b1rep, w2blk, b2, wfg, wfm, bf):
    # Data arrives transposed & time-major: (D, N) with rows on lanes (lane-dense).
    D, N = x_t.shape
    DF = wbig.shape[0]

    # Lane tile: multiple of 128; budget double-buffered (8-sublane padded) I/O tiles
    # plus the two f32 (DF, TN) hidden intermediates against ~12 MiB (safe on all chips).
    bytes_per_col = (5 + 2) * 2 * 8 * 4 + 2 * DF * 4
    TN = (12 * 1024 * 1024) // max(1, bytes_per_col)
    TN = max(128, min(2048, (TN // 128) * 128))
    TN = min(TN, ((N + 127) // 128) * 128)          # don't over-pad tiny inputs
    Np = pl.cdiv(N, TN) * TN
    grid = Np // TN

    def padcols(a):
        return a if Np == N else jnp.pad(a, ((0, 0), (0, Np - N)))

    data_in = [padcols(a) for a in (x_t, g_t, m_t, nv_t, rnn_t)]
    weights = (wbig, bhid, w1blk, b1rep, w2blk, b2, wfg, wfm, bf)

    row_spec = pl.BlockSpec((D, TN), lambda i: (0, i))
    loss_spec = pl.BlockSpec((1, 1), lambda i: (0, 0))

    feat, final, rl, fl, ul = pl.pallas_call(
        _feat_fuse_kernel,
        grid=(grid,),
        out_shape=(jax.ShapeDtypeStruct((D, Np), jnp.float32),
                   jax.ShapeDtypeStruct((D, Np), jnp.float32),
                   jax.ShapeDtypeStruct((1, 1), jnp.float32),
                   jax.ShapeDtypeStruct((1, 1), jnp.float32),
                   jax.ShapeDtypeStruct((1, 1), jnp.float32)),
        in_specs=[row_spec] * 5 + [_full_spec(w) for w in weights],
        out_specs=(row_spec, row_spec, loss_spec, loss_spec, loss_spec),
        compiler_params=pltpu.CompilerParams(
            # (1,1) loss accumulators carried across tiles -> sequential axis.
            # TODO(synk): emit per-tile partial losses + "parallel" to use both v7x cores.
            dimension_semantics=("arbitrary",),
            vmem_limit_bytes=32 * 1024 * 1024),
    )(*data_in, *weights)
    return feat[:, :N], final[:, :N], rl[0, 0], fl[0, 0], ul[0, 0]


# ----------------------------------------------------------------------------
# Parameters (deterministic synthetic init; shapes match the PyTorch module)
# ----------------------------------------------------------------------------
def init_params(key, D, H, CH, FH):
    ks = iter(jax.random.split(key, 32))

    def u(shape, fan_in):
        b = 1.0 / jnp.sqrt(jnp.float32(fan_in))
        return jax.random.uniform(next(ks), shape, jnp.float32, -b, b)

    In = 2 * D + 2 * CH
    p = {}
    # context_mlp: Linear(3D+1, 2CH), Linear(2CH, CH)
    p['cm_w1'] = u((2 * CH, 3 * D + 1), 3 * D + 1); p['cm_b1'] = u((2 * CH,), 3 * D + 1)
    p['cm_w2'] = u((CH, 2 * CH), 2 * CH);           p['cm_b2'] = u((CH,), 2 * CH)
    # context_rnn: GRUCell(2D, CH)
    p['gru_wih'] = u((3 * CH, 2 * D), CH); p['gru_whh'] = u((3 * CH, CH), CH)
    p['gru_bih'] = u((3 * CH,), CH);       p['gru_bhh'] = u((3 * CH,), CH)
    # initial_hidden: Linear(2CH, 2H)
    p['ih_w'] = u((2 * H, 2 * CH), 2 * CH); p['ih_b'] = u((2 * H,), 2 * CH)
    # LSTMCells
    for name in ('f', 'b'):
        p[f'lstm_{name}_wih'] = u((4 * H, In), H)
        p[f'lstm_{name}_whh'] = u((4 * H, H), H)
        p[f'lstm_{name}_bih'] = u((4 * H,), H)
        p[f'lstm_{name}_bhh'] = u((4 * H,), H)
    # decay_inputs
    p['dec_w'] = u((D, D), D); p['dec_b'] = u((D,), D)
    # recurrent_impute: Linear(2H, D)
    p['ri_w'] = u((D, 2 * H), 2 * H); p['ri_b'] = u((D,), 2 * H)
    # feature_impute
    p['fi_w'] = u((D, FH, D), D); p['fi_b'] = u((D, FH), D)
    p['fi_w1'] = u((FH, FH), FH); p['fi_b1'] = u((FH,), FH)
    p['fi_w2'] = u((1, FH), FH);  p['fi_b2'] = u((1,), FH)
    # fuse_imputations: Linear(2D, D)
    p['fu_w'] = u((D, 2 * D), 2 * D); p['fu_b'] = u((D,), 2 * D)
    return p


# ----------------------------------------------------------------------------
# CATSI forward (eval mode)
# ----------------------------------------------------------------------------
def catsi_forward(params, data):
    lengths = data['lengths']           # (B,)
    values = data['values']             # (B, T, D)
    masks = data['masks']               # (B, T, D)
    deltas = data['deltas']             # (B, T, D)
    min_vals = data['min_vals']         # (B, 1, D)
    max_vals = data['max_vals']         # (B, 1, D)
    B, T, D = values.shape
    H = params['ri_w'].shape[1] // 2
    CH = params['gru_whh'].shape[1]
    FH = params['fi_w'].shape[1]

    pad2 = (jnp.arange(1, T + 1, dtype=jnp.float32)[None, :]
            <= lengths[:, None]).astype(jnp.float32)                 # (B, T)
    padding_masks = jnp.repeat(pad2[:, :, None], D, axis=2)          # (B, T, D)

    masks_sum = masks.sum(axis=1)
    data_means = values.sum(axis=1) / masks_sum
    # NOTE: matches the PyTorch reference (sums squared deviations over ALL timesteps).
    data_variance = ((values - data_means[:, None, :]) ** 2).sum(axis=1) / (masks_sum - 1.0)
    data_stdev = jnp.sqrt(data_variance)
    data_missing_rate = 1.0 - masks_sum / padding_masks.sum(axis=1)
    data_stats = jnp.concatenate(
        [lengths[:, None], data_means, data_stdev, data_missing_rate], axis=1)

    min_max_norm = max_vals - min_vals
    normalized_values = (values - min_vals) / min_max_norm
    normalized_means = (data_means - min_vals[:, 0, :]) / min_max_norm[:, 0, :]

    x_prime = jnp.concatenate(
        [normalized_values[:, :1, :], normalized_values[:, :-1, :]], axis=1)

    # InputTemporalDecay: F.linear(d, W*I, b) == d * diag(W) + b
    gamma = jnp.exp(-jax.nn.relu(
        deltas * jnp.diag(params['dec_w'])[None, None, :] + params['dec_b'][None, None, :]))

    x_decay = gamma * x_prime + (1.0 - gamma) * normalized_means[:, None, :]
    x_complement = (masks * normalized_values + (1.0 - masks) * x_decay) * padding_masks

    # tiny context MLP (glue)
    cm_h = jax.nn.relu(data_stats @ params['cm_w1'].T + params['cm_b1'])
    context_mlp = cm_h @ params['cm_w2'].T + params['cm_b2']

    # time-major views (each base tensor transposed once, reused for both recurrences)
    xc_tm = jnp.transpose(x_complement, (1, 0, 2))
    m_tm = jnp.transpose(masks, (1, 0, 2))
    d_tm = jnp.transpose(deltas, (1, 0, 2))

    # --- context GRU (Pallas) ---
    context_rnn = gru_context(
        jnp.concatenate([xc_tm, d_tm], axis=-1), lengths,
        params['gru_wih'].T.astype(MXU_DTYPE),
        params['gru_whh'].T.astype(jnp.float32),
        params['gru_bih'][None, :], params['gru_bhh'][None, :])

    context_vec = jnp.concatenate([context_mlp, context_rnn], axis=1)   # (B, 2CH)
    h0 = context_vec @ params['ih_w'].T + params['ih_b']                # (B, 2H)
    c0 = jnp.tanh(h0)

    # --- bidirectional LSTM imputation (Pallas, fused fwd+bwd) ---
    ctx_tm = jnp.broadcast_to(context_vec[None, :, :], (T, B, 2 * CH))
    inputs_tm = jnp.concatenate([xc_tm, m_tm, ctx_tm], axis=-1)         # (T, B, In)
    wih_cat = jnp.concatenate(
        [params['lstm_f_wih'].T, params['lstm_b_wih'].T], axis=1).astype(MXU_DTYPE)
    zH = jnp.zeros((H, 4 * H), jnp.float32)
    whh_blk = jnp.concatenate(
        [jnp.concatenate([params['lstm_f_whh'].T, zH], axis=1),
         jnp.concatenate([zH, params['lstm_b_whh'].T], axis=1)], axis=0)  # (2H, 8H)
    b_cat = jnp.concatenate(
        [params['lstm_f_bih'] + params['lstm_f_bhh'],
         params['lstm_b_bih'] + params['lstm_b_bhh']])[None, :]
    rnn_tbd = bilstm_impute(
        inputs_tm, h0, c0, wih_cat, whh_blk, b_cat,
        params['ri_w'].T.astype(MXU_DTYPE), params['ri_b'][None, :])     # (T, B, D)

    # --- fused feature imputation + fusion + losses (Pallas, lane-dense tiles) ---
    eye = jnp.eye(D, dtype=jnp.float32)
    wm = params['fi_w'] * (1.0 - eye[:, None, :])          # zero self-feature column
    wbig = wm.reshape(D * FH, D).astype(MXU_DTYPE)
    bhid = params['fi_b'].reshape(D * FH, 1)
    w1blk = jnp.kron(eye, params['fi_w1']).astype(MXU_DTYPE)     # block-diag (D*FH, D*FH)
    b1rep = jnp.tile(params['fi_b1'], (D,)).reshape(D * FH, 1)
    w2blk = jnp.kron(eye, params['fi_w2']).astype(MXU_DTYPE)     # (D, D*FH) block readout
    b2 = params['fi_b2'].reshape(1, 1)
    wfg = params['fu_w'][:, :D]
    wfm = params['fu_w'][:, D:]
    bf = params['fu_b'].reshape(D, 1)

    def to_dn(a_btd):    # (B,T,D) -> (D, T*B), columns time-major (b fastest)
        return jnp.transpose(a_btd, (2, 1, 0)).reshape(D, T * B)

    feat_T, final_T, rnn_loss, feat_loss, fusion_loss = feat_fuse(
        to_dn(x_complement), to_dn(gamma), to_dn(masks), to_dn(normalized_values),
        jnp.transpose(rnn_tbd, (2, 0, 1)).reshape(D, T * B),
        wbig, bhid, w1blk, b1rep, w2blk, b2, wfg, wfm, bf)

    feat_imp = jnp.transpose(feat_T.reshape(D, T, B), (2, 1, 0))        # (B, T, D)
    final_imp = jnp.transpose(final_T.reshape(D, T, B), (2, 1, 0))
    rnn_imp = jnp.transpose(rnn_tbd, (1, 0, 2))

    total_loss = rnn_loss + feat_loss + fusion_loss
    mask_count = masks.sum()

    def rescale(x):
        return jnp.where(padding_masks == 1.0, x * min_max_norm + min_vals, padding_masks)

    return {
        'loss': total_loss / mask_count,
        'loss_count': mask_count,
        'imputations': rescale(final_imp),
        'feat_imp': rescale(feat_imp),
        'hist_imp': rescale(rnn_imp),
        'verbose_loss': [
            ('rnn_loss', rnn_loss / mask_count, mask_count),
            ('feat_loss', feat_loss / mask_count, mask_count),
            ('fusion_loss', fusion_loss / mask_count, mask_count),
        ],
    }


# ----------------------------------------------------------------------------
if __name__ == "__main__":
    B, T, D = 2, 8, 4          # batch, time steps, num_vars
    H, CH, FH = 32, 16, 32     # CATSI(num_vars=4, hidden_size=32, context_hidden=16)

    key = jax.random.PRNGKey(0)
    kp, kv, km, kd = jax.random.split(key, 4)
    params = init_params(kp, D, H, CH, FH)

    values = jax.random.uniform(kv, (B, T, D), jnp.float32, 0.5, 2.0)
    masks = (jax.random.uniform(km, (B, T, D)) > 0.25).astype(jnp.float32)
    masks = masks.at[:, :3, :].set(1.0)     # guarantee >=3 observations per feature
    deltas = jax.random.uniform(kd, (B, T, D), jnp.float32, 0.0, 1.0)
    lengths = jnp.array([float(T), float(T - 2)], jnp.float32)
    min_vals = values.min(axis=1, keepdims=True)   # (B, 1, D)
    max_vals = values.max(axis=1, keepdims=True)

    data = {
        'values': values, 'masks': masks, 'deltas': deltas, 'lengths': lengths,
        'min_vals': min_vals, 'max_vals': max_vals,
    }

    out = catsi_forward(params, data)
    jax.block_until_ready(
        (out['loss'], out['imputations'], out['feat_imp'], out['hist_imp']))
    print("KERNEL_OK")
</pallas_src>

<mosaic_0001>
module attributes {stable_mosaic.version = 11 : i64} {
  func.func @_gru_context_kernel(%arg0: memref<64x8xf32, #tpu.memory_space<vmem>>, %arg1: memref<8x1xf32, #tpu.memory_space<vmem>>, %arg2: memref<8x48xbf16, #tpu.memory_space<vmem>>, %arg3: memref<16x48xf32, #tpu.memory_space<vmem>>, %arg4: memref<1x48xf32, #tpu.memory_space<vmem>>, %arg5: memref<1x48xf32, #tpu.memory_space<vmem>>, %arg6: memref<8x16xf32, #tpu.memory_space<vmem>>, %arg7: memref<8x8x48xf32, #tpu.memory_space<vmem>>) attributes {dimension_semantics = [], scalar_prefetch = 0 : i64, scratch_operands = 1 : i64, tpu.core_type = #tpu.core_type<tc>} {
    %c0 = arith.constant 0 : index
    %c0_0 = arith.constant 0 : index
    %0 = vector.load %arg0[%c0, %c0_0] : memref<64x8xf32, #tpu.memory_space<vmem>>, vector<64x8xf32>
    %1 = arith.truncf %0 : vector<64x8xf32> to vector<64x8xbf16>
    %c0_1 = arith.constant 0 : index
    %c0_2 = arith.constant 0 : index
    %2 = vector.load %arg2[%c0_1, %c0_2] : memref<8x48xbf16, #tpu.memory_space<vmem>>, vector<8x48xbf16>
    %cst = arith.constant dense<0.000000e+00> : vector<64x48xf32>
    %3 = tpu.matmul %1, %2, %cst {dimension_numbers = #tpu.dot_dimension_numbers<[1], [0], [0], [1], [0, 0, 1, 1], [], []>} : vector<64x8xbf16>, vector<8x48xbf16>, vector<64x48xf32> -> vector<64x48xf32>
    %c0_3 = arith.constant 0 : index
    %c0_4 = arith.constant 0 : index
    %4 = vector.load %arg4[%c0_3, %c0_4] : memref<1x48xf32, #tpu.memory_space<vmem>>, vector<1x48xf32>
    %5 = vector.broadcast %4 : vector<1x48xf32> to vector<64x48xf32>
    %6 = arith.addf %3, %5 : vector<64x48xf32>
    %7 = vector.shape_cast %6 : vector<64x48xf32> to vector<8x8x48xf32>
    %c0_5 = arith.constant 0 : index
    %c0_6 = arith.constant 0 : index
    %c0_7 = arith.constant 0 : index
    %8 = vector.load %arg7[%c0_5, %c0_6, %c0_7] : memref<8x8x48xf32, #tpu.memory_space<vmem>>, vector<8x8x48xf32>
    tpu.vector_store %arg7[%c0_5, %c0_6, %c0_7], %7 {strides = array<i32>} : memref<8x8x48xf32, #tpu.memory_space<vmem>>, vector<8x8x48xf32>,
    %c0_8 = arith.constant 0 : index
    %c0_9 = arith.constant 0 : index
    %9 = vector.load %arg1[%c0_8, %c0_9] : memref<8x1xf32, #tpu.memory_space<vmem>>, vector<8x1xf32>
    %cst_10 = arith.constant 0.000000e+00 : f32
    %10 = vector.broadcast %cst_10 : f32 to vector<8x16xf32>
    %cst_11 = arith.constant 0.000000e+00 : f32
    %11 = vector.broadcast %cst_11 : f32 to vector<8x16xf32>
    %c0_12 = arith.constant 0 : index
    %c0_13 = arith.constant 0 : index
    %c0_14 = arith.constant 0 : index
    %12 = vector.load %arg7[%c0_12, %c0_13, %c0_14] : memref<8x8x48xf32, #tpu.memory_space<vmem>>, vector<1x8x48xf32>
    %13 = vector.shape_cast %12 : vector<1x8x48xf32> to vector<8x48xf32>
    %c0_15 = arith.constant 0 : index
    %c0_16 = arith.constant 0 : index
    %14 = vector.load %arg3[%c0_15, %c0_16] : memref<16x48xf32, #tpu.memory_space<vmem>>, vector<16x48xf32>
    %cst_17 = arith.constant dense<0.000000e+00> : vector<8x48xf32>
    %15 = tpu.matmul %10, %14, %cst_17 {dimension_numbers = #tpu.dot_dimension_numbers<[1], [0], [0], [1], [0, 0, 1, 1], [], []>} : vector<8x16xf32>, vector<16x48xf32>, vector<8x48xf32> -> vector<8x48xf32>
    %c0_18 = arith.constant 0 : index
    %c0_19 = arith.constant 0 : index
    %16 = vector.load %arg5[%c0_18, %c0_19] : memref<1x48xf32, #tpu.memory_space<vmem>>, vector<1x48xf32>
    %17 = vector.broadcast %16 : vector<1x48xf32> to vector<8x48xf32>
    %18 = arith.addf %15, %17 : vector<8x48xf32>
    %19 = vector.extract_strided_slice %13 {offsets = [0, 0], sizes = [8, 16], strides = [1, 1]} : vector<8x48xf32> to vector<8x16xf32>
    %20 = vector.extract_strided_slice %18 {offsets = [0, 0], sizes = [8, 16], strides = [1, 1]} : vector<8x48xf32> to vector<8x16xf32>
    %21 = arith.addf %19, %20 : vector<8x16xf32>
    %22 = arith.negf %21 : vector<8x16xf32>
    %23 = math.exp %22 : vector<8x16xf32>
    %cst_20 = arith.constant 1.000000e+00 : f32
    %24 = vector.broadcast %cst_20 : f32 to vector<8x16xf32>
    %25 = arith.addf %24, %23 : vector<8x16xf32>
    %26 = arith.divf %24, %25 : vector<8x16xf32>
    %27 = vector.extract_strided_slice %13 {offsets = [0, 16], sizes = [8, 16], strides = [1, 1]} : vector<8x48xf32> to vector<8x16xf32>
    %28 = vector.extract_strided_slice %18 {offsets = [0, 16], sizes = [8, 16], strides = [1, 1]} : vector<8x48xf32> to vector<8x16xf32>
    %29 = arith.addf %27, %28 : vector<8x16xf32>
    %30 = arith.negf %29 : vector<8x16xf32>
    %31 = math.exp %30 : vector<8x16xf32>
    %cst_21 = arith.constant 1.000000e+00 : f32
    %32 = vector.broadcast %cst_21 : f32 to vector<8x16xf32>
    %33 = arith.addf %32, %31 : vector<8x16xf32>
    %34 = arith.divf %32, %33 : vector<8x16xf32>
    %35 = vector.extract_strided_slice %13 {offsets = [0, 32], sizes = [8, 16], strides = [1, 1]} : vector<8x48xf32> to vector<8x16xf32>
    %36 = vector.extract_strided_slice %18 {offsets = [0, 32], sizes = [8, 16], strides = [1, 1]} : vector<8x48xf32> to vector<8x16xf32>
    %37 = arith.mulf %26, %36 : vector<8x16xf32>
    %38 = arith.addf %35, %37 : vector<8x16xf32>
    %39 = math.tanh %38 : vector<8x16xf32>
    %cst_22 = arith.constant 1.000000e+00 : f32
    %40 = vector.broadcast %cst_22 : f32 to vector<8x16xf32>
    %41 = arith.subf %40, %34 : vector<8x16xf32>
    %42 = arith.mulf %41, %39 : vector<8x16xf32>
    %43 = arith.mulf %34, %10 : vector<8x16xf32>
    %44 = arith.addf %42, %43 : vector<8x16xf32>
    %cst_23 = arith.constant 1.000000e+00 : f32
    %45 = vector.broadcast %cst_23 : f32 to vector<8x1xf32>
    %46 = arith.cmpf ole, %45, %9 : vector<8x1xf32>
    %47 = arith.extui %46 : vector<8x1xi1> to vector<8x1xi32>
    %48 = arith.sitofp %47 : vector<8x1xi32> to vector<8x1xf32>
    %49 = vector.broadcast %48 : vector<8x1xf32> to vector<8x16xf32>
    %50 = arith.mulf %49, %44 : vector<8x16xf32>
    %cst_24 = arith.constant 1.000000e+00 : f32
    %51 = vector.broadcast %cst_24 : f32 to vector<8x1xf32>
    %52 = arith.subf %51, %48 : vector<8x1xf32>
    %53 = vector.broadcast %52 : vector<8x1xf32> to vector<8x16xf32>
    %54 = arith.mulf %53, %11 : vector<8x16xf32>
    %55 = arith.addf %50, %54 : vector<8x16xf32>
    %c1 = arith.constant 1 : index
    %c0_25 = arith.constant 0 : index
    %c0_26 = arith.constant 0 : index
    %56 = vector.load %arg7[%c1, %c0_25, %c0_26] : memref<8x8x48xf32, #tpu.memory_space<vmem>>, vector<1x8x48xf32>
    %57 = vector.shape_cast %56 : vector<1x8x48xf32> to vector<8x48xf32>
    %c0_27 = arith.constant 0 : index
    %c0_28 = arith.constant 0 : index
    %58 = vector.load %arg3[%c0_27, %c0_28] : memref<16x48xf32, #tpu.memory_space<vmem>>, vector<16x48xf32>
    %cst_29 = arith.constant dense<0.000000e+00> : vector<8x48xf32>
    %59 = tpu.matmul %44, %58, %cst_29 {dimension_numbers = #tpu.dot_dimension_numbers<[1], [0], [0], [1], [0, 0, 1, 1], [], []>} : vector<8x16xf32>, vector<16x48xf32>, vector<8x48xf32> -> vector<8x48xf32>
    %c0_30 = arith.constant 0 : index
    %c0_31 = arith.constant 0 : index
    %60 = vector.load %arg5[%c0_30, %c0_31] : memref<1x48xf32, #tpu.memory_space<vmem>>, vector<1x48xf32>
    %61 = vector.broadcast %60 : vector<1x48xf32> to vector<8x48xf32>
    %62 = arith.addf %59, %61 : vector<8x48xf32>
    %63 = vector.extract_strided_slice %57 {offsets = [0, 0], sizes = [8, 16], strides = [1, 1]} : vector<8x48xf32> to vector<8x16xf32>
    %64 = vector.extract_strided_slice %62 {offsets = [0, 0], sizes = [8, 16], strides = [1, 1]} : vector<8x48xf32> to vector<8x16xf32>
    %65 = arith.addf %63, %64 : vector<8x16xf32>
    %66 = arith.negf %65 : vector<8x16xf32>
    %67 = math.exp %66 : vector<8x16xf32>
    %cst_32 = arith.constant 1.000000e+00 : f32
    %68 = vector.broadcast %cst_32 : f32 to vector<8x16xf32>
    %69 = arith.addf %68, %67 : vector<8x16xf32>
    %70 = arith.divf %68, %69 : vector<8x16xf32>
    %71 = vector.extract_strided_slice %57 {offsets = [0, 16], sizes = [8, 16], strides = [1, 1]} : vector<8x48xf32> to vector<8x16xf32>
    %72 = vector.extract_strided_slice %62 {offsets = [0, 16], sizes = [8, 16], strides = [1, 1]} : vector<8x48xf32> to vector<8x16xf32>
    %73 = arith.addf %71, %72 : vector<8x16xf32>
    %74 = arith.negf %73 : vector<8x16xf32>
    %75 = math.exp %74 : vector<8x16xf32>
    %cst_33 = arith.constant 1.000000e+00 : f32
    %76 = vector.broadcast %cst_33 : f32 to vector<8x16xf32>
    %77 = arith.addf %76, %75 : vector<8x16xf32>
    %78 = arith.divf %76, %77 : vector<8x16xf32>
    %79 = vector.extract_strided_slice %57 {offsets = [0, 32], sizes = [8, 16], strides = [1, 1]} : vector<8x48xf32> to vector<8x16xf32>
    %80 = vector.extract_strided_slice %62 {offsets = [0, 32], sizes = [8, 16], strides = [1, 1]} : vector<8x48xf32> to vector<8x16xf32>
    %81 = arith.mulf %70, %80 : vector<8x16xf32>
    %82 = arith.addf %79, %81 : vector<8x16xf32>
    %83 = math.tanh %82 : vector<8x16xf32>
    %cst_34 = arith.constant 1.000000e+00 : f32
    %84 = vector.broadcast %cst_34 : f32 to vector<8x16xf32>
    %85 = arith.subf %84, %78 : vector<8x16xf32>
    %86 = arith.mulf %85, %83 : vector<8x16xf32>
    %87 = arith.mulf %78, %44 : vector<8x16xf32>
    %88 = arith.addf %86, %87 : vector<8x16xf32>
    %cst_35 = arith.constant 2.000000e+00 : f32
    %89 = vector.broadcast %cst_35 : f32 to vector<8x1xf32>
    %90 = arith.cmpf ole, %89, %9 : vector<8x1xf32>
    %91 = arith.extui %90 : vector<8x1xi1> to vector<8x1xi32>
    %92 = arith.sitofp %91 : vector<8x1xi32> to vector<8x1xf32>
    %93 = vector.broadcast %92 : vector<8x1xf32> to vector<8x16xf32>
    %94 = arith.mulf %93, %88 : vector<8x16xf32>
    %cst_36 = arith.constant 1.000000e+00 : f32
    %95 = vector.broadcast %cst_36 : f32 to vector<8x1xf32>
    %96 = arith.subf %95, %92 : vector<8x1xf32>
    %97 = vector.broadcast %96 : vector<8x1xf32> to vector<8x16xf32>
    %98 = arith.mulf %97, %55 : vector<8x16xf32>
    %99 = arith.addf %94, %98 : vector<8x16xf32>
    %c2 = arith.constant 2 : index
    %c0_37 = arith.constant 0 : index
    %c0_38 = arith.constant 0 : index
    %100 = vector.load %arg7[%c2, %c0_37, %c0_38] : memref<8x8x48xf32, #tpu.memory_space<vmem>>, vector<1x8x48xf32>
    %101 = vector.shape_cast %100 : vector<1x8x48xf32> to vector<8x48xf32>
    %c0_39 = arith.constant 0 : index
    %c0_40 = arith.constant 0 : index
    %102 = vector.load %arg3[%c0_39, %c0_40] : memref<16x48xf32, #tpu.memory_space<vmem>>, vector<16x48xf32>
    %cst_41 = arith.constant dense<0.000000e+00> : vector<8x48xf32>
    %103 = tpu.matmul %88, %102, %cst_41 {dimension_numbers = #tpu.dot_dimension_numbers<[1], [0], [0], [1], [0, 0, 1, 1], [], []>} : vector<8x16xf32>, vector<16x48xf32>, vector<8x48xf32> -> vector<8x48xf32>
    %c0_42 = arith.constant 0 : index
    %c0_43 = arith.constant 0 : index
    %104 = vector.load %arg5[%c0_42, %c0_43] : memref<1x48xf32, #tpu.memory_space<vmem>>, vector<1x48xf32>
    %105 = vector.broadcast %104 : vector<1x48xf32> to vector<8x48xf32>
    %106 = arith.addf %103, %105 : vector<8x48xf32>
    %107 = vector.extract_strided_slice %101 {offsets = [0, 0], sizes = [8, 16], strides = [1, 1]} : vector<8x48xf32> to vector<8x16xf32>
    %108 = vector.extract_strided_slice %106 {offsets = [0, 0], sizes = [8, 16], strides = [1, 1]} : vector<8x48xf32> to vector<8x16xf32>
    %109 = arith.addf %107, %108 : vector<8x16xf32>
    %110 = arith.negf %109 : vector<8x16xf32>
    %111 = math.exp %110 : vector<8x16xf32>
    %cst_44 = arith.constant 1.000000e+00 : f32
    %112 = vector.broadcast %cst_44 : f32 to vector<8x16xf32>
    %113 = arith.addf %112, %111 : vector<8x16xf32>
    %114 = arith.divf %112, %113 : vector<8x16xf32>
    %115 = vector.extract_strided_slice %101 {offsets = [0, 16], sizes = [8, 16], strides = [1, 1]} : vector<8x48xf32> to vector<8x16xf32>
    %116 = vector.extract_strided_slice %106 {offsets = [0, 16], sizes = [8, 16], strides = [1, 1]} : vector<8x48xf32> to vector<8x16xf32>
    %117 = arith.addf %115, %116 : vector<8x16xf32>
    %118 = arith.negf %117 : vector<8x16xf32>
    %119 = math.exp %118 : vector<8x16xf32>
    %cst_45 = arith.constant 1.000000e+00 : f32
    %120 = vector.broadcast %cst_45 : f32 to vector<8x16xf32>
    %121 = arith.addf %120, %119 : vector<8x16xf32>
    %122 = arith.divf %120, %121 : vector<8x16xf32>
    %123 = vector.extract_strided_slice %101 {offsets = [0, 32], sizes = [8, 16], strides = [1, 1]} : vector<8x48xf32> to vector<8x16xf32>
    %124 = vector.extract_strided_slice %106 {offsets = [0, 32], sizes = [8, 16], strides = [1, 1]} : vector<8x48xf32> to vector<8x16xf32>
    %125 = arith.mulf %114, %124 : vector<8x16xf32>
    %126 = arith.addf %123, %125 : vector<8x16xf32>
    %127 = math.tanh %126 : vector<8x16xf32>
    %cst_46 = arith.constant 1.000000e+00 : f32
    %128 = vector.broadcast %cst_46 : f32 to vector<8x16xf32>
    %129 = arith.subf %128, %122 : vector<8x16xf32>
    %130 = arith.mulf %129, %127 : vector<8x16xf32>
    %131 = arith.mulf %122, %88 : vector<8x16xf32>
    %132 = arith.addf %130, %131 : vector<8x16xf32>
    %cst_47 = arith.constant 3.000000e+00 : f32
    %133 = vector.broadcast %cst_47 : f32 to vector<8x1xf32>
    %134 = arith.cmpf ole, %133, %9 : vector<8x1xf32>
    %135 = arith.extui %134 : vector<8x1xi1> to vector<8x1xi32>
    %136 = arith.sitofp %135 : vector<8x1xi32> to vector<8x1xf32>
    %137 = vector.broadcast %136 : vector<8x1xf32> to vector<8x16xf32>
    %138 = arith.mulf %137, %132 : vector<8x16xf32>
    %cst_48 = arith.constant 1.000000e+00 : f32
    %139 = vector.broadcast %cst_48 : f32 to vector<8x1xf32>
    %140 = arith.subf %139, %136 : vector<8x1xf32>
    %141 = vector.broadcast %140 : vector<8x1xf32> to vector<8x16xf32>
    %142 = arith.mulf %141, %99 : vector<8x16xf32>
    %143 = arith.addf %138, %142 : vector<8x16xf32>
    %c3 = arith.constant 3 : index
    %c0_49 = arith.constant 0 : index
    %c0_50 = arith.constant 0 : index
    %144 = vector.load %arg7[%c3, %c0_49, %c0_50] : memref<8x8x48xf32, #tpu.memory_space<vmem>>, vector<1x8x48xf32>
    %145 = vector.shape_cast %144 : vector<1x8x48xf32> to vector<8x48xf32>
    %c0_51 = arith.constant 0 : index
    %c0_52 = arith.constant 0 : index
    %146 = vector.load %arg3[%c0_51, %c0_52] : memref<16x48xf32, #tpu.memory_space<vmem>>, vector<16x48xf32>
    %cst_53 = arith.constant dense<0.000000e+00> : vector<8x48xf32>
    %147 = tpu.matmul %132, %146, %cst_53 {dimension_numbers = #tpu.dot_dimension_numbers<[1], [0], [0], [1], [0, 0, 1, 1], [], []>} : vector<8x16xf32>, vector<16x48xf32>, vector<8x48xf32> -> vector<8x48xf32>
    %c0_54 = arith.constant 0 : index
    %c0_55 = arith.constant 0 : index
    %148 = vector.load %arg5[%c0_54, %c0_55] : memref<1x48xf32, #tpu.memory_space<vmem>>, vector<1x48xf32>
    %149 = vector.broadcast %148 : vector<1x48xf32> to vector<8x48xf32>
    %150 = arith.addf %147, %149 : vector<8x48xf32>
    %151 = vector.extract_strided_slice %145 {offsets = [0, 0], sizes = [8, 16], strides = [1, 1]} : vector<8x48xf32> to vector<8x16xf32>
    %152 = vector.extract_strided_slice %150 {offsets = [0, 0], sizes = [8, 16], strides = [1, 1]} : vector<8x48xf32> to vector<8x16xf32>
    %153 = arith.addf %151, %152 : vector<8x16xf32>
    %154 = arith.negf %153 : vector<8x16xf32>
    %155 = math.exp %154 : vector<8x16xf32>
    %cst_56 = arith.constant 1.000000e+00 : f32
    %156 = vector.broadcast %cst_56 : f32 to vector<8x16xf32>
    %157 = arith.addf %156, %155 : vector<8x16xf32>
    %158 = arith.divf %156, %157 : vector<8x16xf32>
    %159 = vector.extract_strided_slice %145 {offsets = [0, 16], sizes = [8, 16], strides = [1, 1]} : vector<8x48xf32> to vector<8x16xf32>
    %160 = vector.extract_strided_slice %150 {offsets = [0, 16], sizes = [8, 16], strides = [1, 1]} : vector<8x48xf32> to vector<8x16xf32>
    %161 = arith.addf %159, %160 : vector<8x16xf32>
    %162 = arith.negf %161 : vector<8x16xf32>
    %163 = math.exp %162 : vector<8x16xf32>
    %cst_57 = arith.constant 1.000000e+00 : f32
    %164 = vector.broadcast %cst_57 : f32 to vector<8x16xf32>
    %165 = arith.addf %164, %163 : vector<8x16xf32>
    %166 = arith.divf %164, %165 : vector<8x16xf32>
    %167 = vector.extract_strided_slice %145 {offsets = [0, 32], sizes = [8, 16], strides = [1, 1]} : vector<8x48xf32> to vector<8x16xf32>
    %168 = vector.extract_strided_slice %150 {offsets = [0, 32], sizes = [8, 16], strides = [1, 1]} : vector<8x48xf32> to vector<8x16xf32>
    %169 = arith.mulf %158, %168 : vector<8x16xf32>
    %170 = arith.addf %167, %169 : vector<8x16xf32>
    %171 = math.tanh %170 : vector<8x16xf32>
    %cst_58 = arith.constant 1.000000e+00 : f32
    %172 = vector.broadcast %cst_58 : f32 to vector<8x16xf32>
    %173 = arith.subf %172, %166 : vector<8x16xf32>
    %174 = arith.mulf %173, %171 : vector<8x16xf32>
    %175 = arith.mulf %166, %132 : vector<8x16xf32>
    %176 = arith.addf %174, %175 : vector<8x16xf32>
    %cst_59 = arith.constant 4.000000e+00 : f32
    %177 = vector.broadcast %cst_59 : f32 to vector<8x1xf32>
    %178 = arith.cmpf ole, %177, %9 : vector<8x1xf32>
    %179 = arith.extui %178 : vector<8x1xi1> to vector<8x1xi32>
    %180 = arith.sitofp %179 : vector<8x1xi32> to vector<8x1xf32>
    %181 = vector.broadcast %180 : vector<8x1xf32> to vector<8x16xf32>
    %182 = arith.mulf %181, %176 : vector<8x16xf32>
    %cst_60 = arith.constant 1.000000e+00 : f32
    %183 = vector.broadcast %cst_60 : f32 to vector<8x1xf32>
    %184 = arith.subf %183, %180 : vector<8x1xf32>
    %185 = vector.broadcast %184 : vector<8x1xf32> to vector<8x16xf32>
    %186 = arith.mulf %185, %143 : vector<8x16xf32>
    %187 = arith.addf %182, %186 : vector<8x16xf32>
    %c4 = arith.constant 4 : index
    %c0_61 = arith.constant 0 : index
    %c0_62 = arith.constant 0 : index
    %188 = vector.load %arg7[%c4, %c0_61, %c0_62] : memref<8x8x48xf32, #tpu.memory_space<vmem>>, vector<1x8x48xf32>
    %189 = vector.shape_cast %188 : vector<1x8x48xf32> to vector<8x48xf32>
    %c0_63 = arith.constant 0 : index
    %c0_64 = arith.constant 0 : index
    %190 = vector.load %arg3[%c0_63, %c0_64] : memref<16x48xf32, #tpu.memory_space<vmem>>, vector<16x48xf32>
    %cst_65 = arith.constant dense<0.000000e+00> : vector<8x48xf32>
    %191 = tpu.matmul %176, %190, %cst_65 {dimension_numbers = #tpu.dot_dimension_numbers<[1], [0], [0], [1], [0, 0, 1, 1], [], []>} : vector<8x16xf32>, vector<16x48xf32>, vector<8x48xf32> -> vector<8x48xf32>
    %c0_66 = arith.constant 0 : index
    %c0_67 = arith.constant 0 : index
    %192 = vector.load %arg5[%c0_66, %c0_67] : memref<1x48xf32, #tpu.memory_space<vmem>>, vector<1x48xf32>
    %193 = vector.broadcast %192 : vector<1x48xf32> to vector<8x48xf32>
    %194 = arith.addf %191, %193 : vector<8x48xf32>
    %195 = vector.extract_strided_slice %189 {offsets = [0, 0], sizes = [8, 16], strides = [1, 1]} : vector<8x48xf32> to vector<8x16xf32>
    %196 = vector.extract_strided_slice %194 {offsets = [0, 0], sizes = [8, 16], strides = [1, 1]} : vector<8x48xf32> to vector<8x16xf32>
    %197 = arith.addf %195, %196 : vector<8x16xf32>
    %198 = arith.negf %197 : vector<8x16xf32>
    %199 = math.exp %198 : vector<8x16xf32>
    %cst_68 = arith.constant 1.000000e+00 : f32
    %200 = vector.broadcast %cst_68 : f32 to vector<8x16xf32>
    %201 = arith.addf %200, %199 : vector<8x16xf32>
    %202 = arith.divf %200, %201 : vector<8x16xf32>
    %203 = vector.extract_strided_slice %189 {offsets = [0, 16], sizes = [8, 16], strides = [1, 1]} : vector<8x48xf32> to vector<8x16xf32>
    %204 = vector.extract_strided_slice %194 {offsets = [0, 16], sizes = [8, 16], strides = [1, 1]} : vector<8x48xf32> to vector<8x16xf32>
    %205 = arith.addf %203, %204 : vector<8x16xf32>
    %206 = arith.negf %205 : vector<8x16xf32>
    %207 = math.exp %206 : vector<8x16xf32>
    %cst_69 = arith.constant 1.000000e+00 : f32
    %208 = vector.broadcast %cst_69 : f32 to vector<8x16xf32>
    %209 = arith.addf %208, %207 : vector<8x16xf32>
    %210 = arith.divf %208, %209 : vector<8x16xf32>
    %211 = vector.extract_strided_slice %189 {offsets = [0, 32], sizes = [8, 16], strides = [1, 1]} : vector<8x48xf32> to vector<8x16xf32>
    %212 = vector.extract_strided_slice %194 {offsets = [0, 32], sizes = [8, 16], strides = [1, 1]} : vector<8x48xf32> to vector<8x16xf32>
    %213 = arith.mulf %202, %212 : vector<8x16xf32>
    %214 = arith.addf %211, %213 : vector<8x16xf32>
    %215 = math.tanh %214 : vector<8x16xf32>
    %cst_70 = arith.constant 1.000000e+00 : f32
    %216 = vector.broadcast %cst_70 : f32 to vector<8x16xf32>
    %217 = arith.subf %216, %210 : vector<8x16xf32>
    %218 = arith.mulf %217, %215 : vector<8x16xf32>
    %219 = arith.mulf %210, %176 : vector<8x16xf32>
    %220 = arith.addf %218, %219 : vector<8x16xf32>
    %cst_71 = arith.constant 5.000000e+00 : f32
    %221 = vector.broadcast %cst_71 : f32 to vector<8x1xf32>
    %222 = arith.cmpf ole, %221, %9 : vector<8x1xf32>
    %223 = arith.extui %222 : vector<8x1xi1> to vector<8x1xi32>
    %224 = arith.sitofp %223 : vector<8x1xi32> to vector<8x1xf32>
    %225 = vector.broadcast %224 : vector<8x1xf32> to vector<8x16xf32>
    %226 = arith.mulf %225, %220 : vector<8x16xf32>
    %cst_72 = arith.constant 1.000000e+00 : f32
    %227 = vector.broadcast %cst_72 : f32 to vector<8x1xf32>
    %228 = arith.subf %227, %224 : vector<8x1xf32>
    %229 = vector.broadcast %228 : vector<8x1xf32> to vector<8x16xf32>
    %230 = arith.mulf %229, %187 : vector<8x16xf32>
    %231 = arith.addf %226, %230 : vector<8x16xf32>
    %c5 = arith.constant 5 : index
    %c0_73 = arith.constant 0 : index
    %c0_74 = arith.constant 0 : index
    %232 = vector.load %arg7[%c5, %c0_73, %c0_74] : memref<8x8x48xf32, #tpu.memory_space<vmem>>, vector<1x8x48xf32>
    %233 = vector.shape_cast %232 : vector<1x8x48xf32> to vector<8x48xf32>
    %c0_75 = arith.constant 0 : index
    %c0_76 = arith.constant 0 : index
    %234 = vector.load %arg3[%c0_75, %c0_76] : memref<16x48xf32, #tpu.memory_space<vmem>>, vector<16x48xf32>
    %cst_77 = arith.constant dense<0.000000e+00> : vector<8x48xf32>
    %235 = tpu.matmul %220, %234, %cst_77 {dimension_numbers = #tpu.dot_dimension_numbers<[1], [0], [0], [1], [0, 0, 1, 1], [], []>} : vector<8x16xf32>, vector<16x48xf32>, vector<8x48xf32> -> vector<8x48xf32>
    %c0_78 = arith.constant 0 : index
    %c0_79 = arith.constant 0 : index
    %236 = vector.load %arg5[%c0_78, %c0_79] : memref<1x48xf32, #tpu.memory_space<vmem>>, vector<1x48xf32>
    %237 = vector.broadcast %236 : vector<1x48xf32> to vector<8x48xf32>
    %238 = arith.addf %235, %237 : vector<8x48xf32>
    %239 = vector.extract_strided_slice %233 {offsets = [0, 0], sizes = [8, 16], strides = [1, 1]} : vector<8x48xf32> to vector<8x16xf32>
    %240 = vector.extract_strided_slice %238 {offsets = [0, 0], sizes = [8, 16], strides = [1, 1]} : vector<8x48xf32> to vector<8x16xf32>
    %241 = arith.addf %239, %240 : vector<8x16xf32>
    %242 = arith.negf %241 : vector<8x16xf32>
    %243 = math.exp %242 : vector<8x16xf32>
    %cst_80 = arith.constant 1.000000e+00 : f32
    %244 = vector.broadcast %cst_80 : f32 to vector<8x16xf32>
    %245 = arith.addf %244, %243 : vector<8x16xf32>
    %246 = arith.divf %244, %245 : vector<8x16xf32>
    %247 = vector.extract_strided_slice %233 {offsets = [0, 16], sizes = [8, 16], strides = [1, 1]} : vector<8x48xf32> to vector<8x16xf32>
    %248 = vector.extract_strided_slice %238 {offsets = [0, 16], sizes = [8, 16], strides = [1, 1]} : vector<8x48xf32> to vector<8x16xf32>
    %249 = arith.addf %247, %248 : vector<8x16xf32>
    %250 = arith.negf %249 : vector<8x16xf32>
    %251 = math.exp %250 : vector<8x16xf32>
    %cst_81 = arith.constant 1.000000e+00 : f32
    %252 = vector.broadcast %cst_81 : f32 to vector<8x16xf32>
    %253 = arith.addf %252, %251 : vector<8x16xf32>
    %254 = arith.divf %252, %253 : vector<8x16xf32>
    %255 = vector.extract_strided_slice %233 {offsets = [0, 32], sizes = [8, 16], strides = [1, 1]} : vector<8x48xf32> to vector<8x16xf32>
    %256 = vector.extract_strided_slice %238 {offsets = [0, 32], sizes = [8, 16], strides = [1, 1]} : vector<8x48xf32> to vector<8x16xf32>
    %257 = arith.mulf %246, %256 : vector<8x16xf32>
    %258 = arith.addf %255, %257 : vector<8x16xf32>
    %259 = math.tanh %258 : vector<8x16xf32>
    %cst_82 = arith.constant 1.000000e+00 : f32
    %260 = vector.broadcast %cst_82 : f32 to vector<8x16xf32>
    %261 = arith.subf %260, %254 : vector<8x16xf32>
    %262 = arith.mulf %261, %259 : vector<8x16xf32>
    %263 = arith.mulf %254, %220 : vector<8x16xf32>
    %264 = arith.addf %262, %263 : vector<8x16xf32>
    %cst_83 = arith.constant 6.000000e+00 : f32
    %265 = vector.broadcast %cst_83 : f32 to vector<8x1xf32>
    %266 = arith.cmpf ole, %265, %9 : vector<8x1xf32>
    %267 = arith.extui %266 : vector<8x1xi1> to vector<8x1xi32>
    %268 = arith.sitofp %267 : vector<8x1xi32> to vector<8x1xf32>
    %269 = vector.broadcast %268 : vector<8x1xf32> to vector<8x16xf32>
    %270 = arith.mulf %269, %264 : vector<8x16xf32>
    %cst_84 = arith.constant 1.000000e+00 : f32
    %271 = vector.broadcast %cst_84 : f32 to vector<8x1xf32>
    %272 = arith.subf %271, %268 : vector<8x1xf32>
    %273 = vector.broadcast %272 : vector<8x1xf32> to vector<8x16xf32>
    %274 = arith.mulf %273, %231 : vector<8x16xf32>
    %275 = arith.addf %270, %274 : vector<8x16xf32>
    %c6 = arith.constant 6 : index
    %c0_85 = arith.constant 0 : index
    %c0_86 = arith.constant 0 : index
    %276 = vector.load %arg7[%c6, %c0_85, %c0_86] : memref<8x8x48xf32, #tpu.memory_space<vmem>>, vector<1x8x48xf32>
    %277 = vector.shape_cast %276 : vector<1x8x48xf32> to vector<8x48xf32>
    %c0_87 = arith.constant 0 : index
    %c0_88 = arith.constant 0 : index
    %278 = vector.load %arg3[%c0_87, %c0_88] : memref<16x48xf32, #tpu.memory_space<vmem>>, vector<16x48xf32>
    %cst_89 = arith.constant dense<0.000000e+00> : vector<8x48xf32>
    %279 = tpu.matmul %264, %278, %cst_89 {dimension_numbers = #tpu.dot_dimension_numbers<[1], [0], [0], [1], [0, 0, 1, 1], [], []>} : vector<8x16xf32>, vector<16x48xf32>, vector<8x48xf32> -> vector<8x48xf32>
    %c0_90 = arith.constant 0 : index
    %c0_91 = arith.constant 0 : index
    %280 = vector.load %arg5[%c0_90, %c0_91] : memref<1x48xf32, #tpu.memory_space<vmem>>, vector<1x48xf32>
    %281 = vector.broadcast %280 : vector<1x48xf32> to vector<8x48xf32>
    %282 = arith.addf %279, %281 : vector<8x48xf32>
    %283 = vector.extract_strided_slice %277 {offsets = [0, 0], sizes = [8, 16], strides = [1, 1]} : vector<8x48xf32> to vector<8x16xf32>
    %284 = vector.extract_strided_slice %282 {offsets = [0, 0], sizes = [8, 16], strides = [1, 1]} : vector<8x48xf32> to vector<8x16xf32>
    %285 = arith.addf %283, %284 : vector<8x16xf32>
    %286 = arith.negf %285 : vector<8x16xf32>
    %287 = math.exp %286 : vector<8x16xf32>
    %cst_92 = arith.constant 1.000000e+00 : f32
    %288 = vector.broadcast %cst_92 : f32 to vector<8x16xf32>
    %289 = arith.addf %288, %287 : vector<8x16xf32>
    %290 = arith.divf %288, %289 : vector<8x16xf32>
    %291 = vector.extract_strided_slice %277 {offsets = [0, 16], sizes = [8, 16], strides = [1, 1]} : vector<8x48xf32> to vector<8x16xf32>
    %292 = vector.extract_strided_slice %282 {offsets = [0, 16], sizes = [8, 16], strides = [1, 1]} : vector<8x48xf32> to vector<8x16xf32>
    %293 = arith.addf %291, %292 : vector<8x16xf32>
    %294 = arith.negf %293 : vector<8x16xf32>
    %295 = math.exp %294 : vector<8x16xf32>
    %cst_93 = arith.constant 1.000000e+00 : f32
    %296 = vector.broadcast %cst_93 : f32 to vector<8x16xf32>
    %297 = arith.addf %296, %295 : vector<8x16xf32>
    %298 = arith.divf %296, %297 : vector<8x16xf32>
    %299 = vector.extract_strided_slice %277 {offsets = [0, 32], sizes = [8, 16], strides = [1, 1]} : vector<8x48xf32> to vector<8x16xf32>
    %300 = vector.extract_strided_slice %282 {offsets = [0, 32], sizes = [8, 16], strides = [1, 1]} : vector<8x48xf32> to vector<8x16xf32>
    %301 = arith.mulf %290, %300 : vector<8x16xf32>
    %302 = arith.addf %299, %301 : vector<8x16xf32>
    %303 = math.tanh %302 : vector<8x16xf32>
    %cst_94 = arith.constant 1.000000e+00 : f32
    %304 = vector.broadcast %cst_94 : f32 to vector<8x16xf32>
    %305 = arith.subf %304, %298 : vector<8x16xf32>
    %306 = arith.mulf %305, %303 : vector<8x16xf32>
    %307 = arith.mulf %298, %264 : vector<8x16xf32>
    %308 = arith.addf %306, %307 : vector<8x16xf32>
    %cst_95 = arith.constant 7.000000e+00 : f32
    %309 = vector.broadcast %cst_95 : f32 to vector<8x1xf32>
    %310 = arith.cmpf ole, %309, %9 : vector<8x1xf32>
    %311 = arith.extui %310 : vector<8x1xi1> to vector<8x1xi32>
    %312 = arith.sitofp %311 : vector<8x1xi32> to vector<8x1xf32>
    %313 = vector.broadcast %312 : vector<8x1xf32> to vector<8x16xf32>
    %314 = arith.mulf %313, %308 : vector<8x16xf32>
    %cst_96 = arith.constant 1.000000e+00 : f32
    %315 = vector.broadcast %cst_96 : f32 to vector<8x1xf32>
    %316 = arith.subf %315, %312 : vector<8x1xf32>
    %317 = vector.broadcast %316 : vector<8x1xf32> to vector<8x16xf32>
    %318 = arith.mulf %317, %275 : vector<8x16xf32>
    %319 = arith.addf %314, %318 : vector<8x16xf32>
    %c7 = arith.constant 7 : index
    %c0_97 = arith.constant 0 : index
    %c0_98 = arith.constant 0 : index
    %320 = vector.load %arg7[%c7, %c0_97, %c0_98] : memref<8x8x48xf32, #tpu.memory_space<vmem>>, vector<1x8x48xf32>
    %321 = vector.shape_cast %320 : vector<1x8x48xf32> to vector<8x48xf32>
    %c0_99 = arith.constant 0 : index
    %c0_100 = arith.constant 0 : index
    %322 = vector.load %arg3[%c0_99, %c0_100] : memref<16x48xf32, #tpu.memory_space<vmem>>, vector<16x48xf32>
    %cst_101 = arith.constant dense<0.000000e+00> : vector<8x48xf32>
    %323 = tpu.matmul %308, %322, %cst_101 {dimension_numbers = #tpu.dot_dimension_numbers<[1], [0], [0], [1], [0, 0, 1, 1], [], []>} : vector<8x16xf32>, vector<16x48xf32>, vector<8x48xf32> -> vector<8x48xf32>
    %c0_102 = arith.constant 0 : index
    %c0_103 = arith.constant 0 : index
    %324 = vector.load %arg5[%c0_102, %c0_103] : memref<1x48xf32, #tpu.memory_space<vmem>>, vector<1x48xf32>
    %325 = vector.broadcast %324 : vector<1x48xf32> to vector<8x48xf32>
    %326 = arith.addf %323, %325 : vector<8x48xf32>
    %327 = vector.extract_strided_slice %321 {offsets = [0, 0], sizes = [8, 16], strides = [1, 1]} : vector<8x48xf32> to vector<8x16xf32>
    %328 = vector.extract_strided_slice %326 {offsets = [0, 0], sizes = [8, 16], strides = [1, 1]} : vector<8x48xf32> to vector<8x16xf32>
    %329 = arith.addf %327, %328 : vector<8x16xf32>
    %330 = arith.negf %329 : vector<8x16xf32>
    %331 = math.exp %330 : vector<8x16xf32>
    %cst_104 = arith.constant 1.000000e+00 : f32
    %332 = vector.broadcast %cst_104 : f32 to vector<8x16xf32>
    %333 = arith.addf %332, %331 : vector<8x16xf32>
    %334 = arith.divf %332, %333 : vector<8x16xf32>
    %335 = vector.extract_strided_slice %321 {offsets = [0, 16], sizes = [8, 16], strides = [1, 1]} : vector<8x48xf32> to vector<8x16xf32>
    %336 = vector.extract_strided_slice %326 {offsets = [0, 16], sizes = [8, 16], strides = [1, 1]} : vector<8x48xf32> to vector<8x16xf32>
    %337 = arith.addf %335, %336 : vector<8x16xf32>
    %338 = arith.negf %337 : vector<8x16xf32>
    %339 = math.exp %338 : vector<8x16xf32>
    %cst_105 = arith.constant 1.000000e+00 : f32
    %340 = vector.broadcast %cst_105 : f32 to vector<8x16xf32>
    %341 = arith.addf %340, %339 : vector<8x16xf32>
    %342 = arith.divf %340, %341 : vector<8x16xf32>
    %343 = vector.extract_strided_slice %321 {offsets = [0, 32], sizes = [8, 16], strides = [1, 1]} : vector<8x48xf32> to vector<8x16xf32>
    %344 = vector.extract_strided_slice %326 {offsets = [0, 32], sizes = [8, 16], strides = [1, 1]} : vector<8x48xf32> to vector<8x16xf32>
    %345 = arith.mulf %334, %344 : vector<8x16xf32>
    %346 = arith.addf %343, %345 : vector<8x16xf32>
    %347 = math.tanh %346 : vector<8x16xf32>
    %cst_106 = arith.constant 1.000000e+00 : f32
    %348 = vector.broadcast %cst_106 : f32 to vector<8x16xf32>
    %349 = arith.subf %348, %342 : vector<8x16xf32>
    %350 = arith.mulf %349, %347 : vector<8x16xf32>
    %351 = arith.mulf %342, %308 : vector<8x16xf32>
    %352 = arith.addf %350, %351 : vector<8x16xf32>
    %cst_107 = arith.constant 8.000000e+00 : f32
    %353 = vector.broadcast %cst_107 : f32 to vector<8x1xf32>
    %354 = arith.cmpf ole, %353, %9 : vector<8x1xf32>
    %355 = arith.extui %354 : vector<8x1xi1> to vector<8x1xi32>
    %356 = arith.sitofp %355 : vector<8x1xi32> to vector<8x1xf32>
    %357 = vector.broadcast %356 : vector<8x1xf32> to vector<8x16xf32>
    %358 = arith.mulf %357, %352 : vector<8x16xf32>
    %cst_108 = arith.constant 1.000000e+00 : f32
    %359 = vector.broadcast %cst_108 : f32 to vector<8x1xf32>
    %360 = arith.subf %359, %356 : vector<8x1xf32>
    %361 = vector.broadcast %360 : vector<8x1xf32> to vector<8x16xf32>
    %362 = arith.mulf %361, %319 : vector<8x16xf32>
    %363 = arith.addf %358, %362 : vector<8x16xf32>
    %c0_109 = arith.constant 0 : index
    %c0_110 = arith.constant 0 : index
    %364 = vector.load %arg6[%c0_109, %c0_110] : memref<8x16xf32, #tpu.memory_space<vmem>>, vector<8x16xf32>
    tpu.vector_store %arg6[%c0_109, %c0_110], %363 {strides = array<i32>} : memref<8x16xf32, #tpu.memory_space<vmem>>, vector<8x16xf32>,
    return
  }
}

</mosaic_0001>

<llo_original>
// kernel: tpu_custom_call.1
$region0: #{tpu_custom_call.1}
  #allocation0 [shape = 'u32[]', space=smem, size = 0x4, offset = 0x4, fixed_abs, tag = 'smem constant byte address 0x4 - core index']
  #allocation1 [shape = 'u32[144,128]{1,0:T(1,128)}', space=vmem, size = 0x12000, scoped, tag = 'internal scratch']
  #allocation2 [shape = 'f32[8,8,48]{2,1,0:T(8,128)}', space=vmem, size = 0x8000, scoped, tag = 'scratch operand']
  %s0 = inlined_call_operand.vmem [shape: f32[64,8], index: 0, kind: input, shape index: {}]
  %s1 = inlined_call_operand.vmem [shape: f32[8,1], index: 1, kind: input, shape index: {}]
  %s2 = inlined_call_operand.vmem [shape: bf16[8,48], index: 2, kind: input, shape index: {}]
  %s3 = inlined_call_operand.vmem [shape: f32[16,48], index: 3, kind: input, shape index: {}]
  %s4 = inlined_call_operand.vmem [shape: f32[1,48], index: 4, kind: input, shape index: {}]
  %s5 = inlined_call_operand.vmem [shape: f32[1,48], index: 5, kind: input, shape index: {}]
  %s6 = inlined_call_operand.hbm [shape: f32[8,16], index: 6, kind: output, shape index: {}]
  %s7 = sld [smem:[#allocation0]]
  $region34: #{tpu_custom_call.1} parent=0
    _
  %s9 = ssub.s32 1, %s7
  %s10 = scalar_select 0, %s9, %s7
  $region1: #{tpu_custom_call.1} parent=0
    #allocation3 [shape = 'u8[4096]{0}', space=vmem, size = 0x1000, scoped, tag = 'output window, operand 0, single buffered']
    #allocation4 [shape = 's32[1]{0}', space=sflag, size = 0x4, scoped, tag = 'scoped memory for tpu_custom_call.1']
    %11 = vsyncpa [#allocation4], 0
    // Predicated region
    $region2: #{tpu_custom_call.1} parent=1 // pred_check
      _
    $region3: #{tpu_custom_call.1} parent=1 // pred_check_branch
      %13 = sbr.rel (0) target = $region5
    $region4: #{tpu_custom_call.1} parent=1 // pred_region
      _
    $region5: #{tpu_custom_call.1} parent=1 // pred_fallthru
      _
    // Predicated region
    $region6: #{tpu_custom_call.1} parent=1 // pred_check
      _
    $region7: #{tpu_custom_call.1} parent=1 // pred_check_branch
      %15 = sbr.rel (0) target = $region9
    $region8: #{tpu_custom_call.1} parent=1 // pred_region
      _
    $region9: #{tpu_custom_call.1} parent=1 // pred_fallthru
      _
    // Predicated region
    $region10: #{tpu_custom_call.1} parent=1 // pred_check
      _
    $region11: #{tpu_custom_call.1} parent=1 // pred_check_branch
      %17 = sbr.rel (0) target = $region13
    $region12: #{tpu_custom_call.1} parent=1 // pred_region
      _
    $region13: #{tpu_custom_call.1} parent=1 // pred_fallthru
      _
    // Predicated region
    $region14: #{tpu_custom_call.1} parent=1 // pred_check
      _
    $region15: #{tpu_custom_call.1} parent=1 // pred_check_branch
      %19 = sbr.rel (0) target = $region17
    $region16: #{tpu_custom_call.1} parent=1 // pred_region
      _
    $region17: #{tpu_custom_call.1} parent=1 // pred_fallthru
      _
    // Predicated region
    $region18: #{tpu_custom_call.1} parent=1 // pred_check
      _
    $region19: #{tpu_custom_call.1} parent=1 // pred_check_branch
      %21 = sbr.rel (0) target = $region21
    $region20: #{tpu_custom_call.1} parent=1 // pred_region
      _
    $region21: #{tpu_custom_call.1} parent=1 // pred_fallthru
      _
    // Predicated region
    $region22: #{tpu_custom_call.1} parent=1 // pred_check
      _
    $region23: #{tpu_custom_call.1} parent=1 // pred_check_branch
      %23 = sbr.rel (0) target = $region25
    $region24: #{tpu_custom_call.1} parent=1 // pred_region
      _
    $region25: #{tpu_custom_call.1} parent=1 // pred_fallthru
      _
    %v25 = vld [vmem:[%s0] sm:$0xff]
    %v26 = vld [vmem:[%s0 + $0x8] sm:$0xff]
    %v27 = vld [vmem:[%s0 + $0x10] sm:$0xff]
    %v28 = vld [vmem:[%s0 + $0x18] sm:$0xff]
    %v29 = vld [vmem:[%s0 + $0x20] sm:$0xff]
    %v30 = vld [vmem:[%s0 + $0x28] sm:$0xff]
    %v31 = vld [vmem:[%s0 + $0x30] sm:$0xff]
    %v32 = vld [vmem:[%s0 + $0x38] sm:$0xff]
    %v33 = vpack.c.bf16 %v26, %v25
    %v34 = vpack.c.bf16 %v28, %v27
    %v35 = vpack.c.bf16 %v30, %v29
    %v36 = vpack.c.bf16 %v32, %v31
    %v37 = vld [vmem:[%s2] sm:$0xf]
    %v38 = vld [vmem:[%s4] sm:$0x1]
    %v40 = vlaneseq
    %v41 = vshrl.u32 %v40, 7
    %v42 = vsub.s32 0, %v41
    %v43 = vrot.slane %v38, %v42
    %vm45 = vcmask 64512
    %v47 = vsel %vm45, %v33, 0
    %v50 = vsel %vm45, %v34, 0
    %v53 = vsel %vm45, %v35, 0
    %v56 = vsel %vm45, %v36, 0
    %vm58 = vcmask 1043456
    %v60 = vsel %vm58, %v37, 0
    %62 = vmatprep.subr.bf16.mxu0 0
    %63 = vmatpush1.bf16.msra.mxu0 %v60
    %64 = vmatprep.subr.bf16.mxu0 0
    %65 = vmatpush1.bf16.msra.mxu0 0
    %66 = vmatprep.subr.bf16.mxu0 0
    %67 = vmatpush1.bf16.msra.mxu0 0
    %68 = vmatprep.subr.bf16.mxu0 0
    %69 = vmatpush1.bf16.msra.mxu0 0
    %70 = vmatprep.subr.bf16.mxu0 0
    %71 = vmatpush1.bf16.msra.mxu0 0
    %72 = vmatprep.subr.bf16.mxu0 0
    %73 = vmatpush1.bf16.msra.mxu0 0
    %74 = vmatprep.subr.bf16.mxu0 0
    %75 = vmatpush1.bf16.msra.mxu0 0
    %76 = vmatprep.subr.bf16.mxu0 0
    %77 = vmatpush1.bf16.msra.mxu0 0
    %78 = vmatprep.subr.bf16.mxu0 0
    %79 = vmatpush1.bf16.msra.mxu0 0
    %80 = vmatprep.subr.bf16.mxu0 0
    %81 = vmatpush1.bf16.msra.mxu0 0
    %82 = vmatprep.subr.bf16.mxu0 0
    %83 = vmatpush1.bf16.msra.mxu0 0
    %84 = vmatprep.subr.bf16.mxu0 0
    %85 = vmatpush1.bf16.msra.mxu0 0
    %86 = vmatprep.subr.bf16.mxu0 0
    %87 = vmatpush1.bf16.msra.mxu0 0
    %88 = vmatprep.subr.bf16.mxu0 0
    %89 = vmatpush1.bf16.msra.mxu0 0
    %90 = vmatprep.subr.bf16.mxu0 0
    %91 = vmatpush1.bf16.msra.mxu0 0
    %92 = vmatprep.subr.bf16.mxu0 0
    %93 = vmatpush1.bf16.msra.mxu0 0
    %94 = vmatprep.mubr.bf16.mxu0 0
    %95 = vmatmul.mubr.bf16.gmra.mrb[0].mxu0 %v47
    %v96 = vpop.f32.mrb[0].mxu0
    %v97 = vadd.f32 %v43, %v96
    %v98 = vpop.f32.mrb[0].mxu0
    %v99 = vpop.f32.mrb[0].mxu0
    %v100 = vadd.f32 %v43, %v99
    %v101 = vpop.f32.mrb[0].mxu0
    %102 = vmatprep.mubr.bf16.mxu0 0
    %103 = vmatmul.mubr.bf16.gmra.mrb[0].mxu0 %v50
    %v104 = vpop.f32.mrb[0].mxu0
    %v105 = vadd.f32 %v43, %v104
    %v106 = vpop.f32.mrb[0].mxu0
    %v107 = vpop.f32.mrb[0].mxu0
    %v108 = vadd.f32 %v43, %v107
    %v109 = vpop.f32.mrb[0].mxu0
    %110 = vmatprep.mubr.bf16.mxu0 0
    %111 = vmatmul.mubr.bf16.gmra.mrb[0].mxu0 %v53
    %v112 = vpop.f32.mrb[0].mxu0
    %v113 = vadd.f32 %v43, %v112
    %v114 = vpop.f32.mrb[0].mxu0
    %v115 = vpop.f32.mrb[0].mxu0
    %v116 = vadd.f32 %v43, %v115
    %v117 = vpop.f32.mrb[0].mxu0
    %118 = vmatprep.mubr.bf16.mxu0 0
    %119 = vmatmul.mubr.bf16.gmra.mrb[0].mxu0 %v56
    %v120 = vpop.f32.mrb[0].mxu0
    %v121 = vadd.f32 %v43, %v120
    %v122 = vpop.f32.mrb[0].mxu0
    %v123 = vpop.f32.mrb[0].mxu0
    %v124 = vadd.f32 %v43, %v123
    %v125 = vpop.f32.mrb[0].mxu0
    %126 = vdwg.mxu0
    %vm127 = vcmask 392192
    %128 = vst.msk [vmem:[#allocation2] sm:$0xff] %vm127, %v97
    %129 = vst.msk [vmem:[#allocation2 + $0x8] sm:$0xff] %vm127, %v100
    %130 = vst.msk [vmem:[#allocation2 + $0x10] sm:$0xff] %vm127, %v105
    %131 = vst.msk [vmem:[#allocation2 + $0x18] sm:$0xff] %vm127, %v108
    %132 = vst.msk [vmem:[#allocation2 + $0x20] sm:$0xff] %vm127, %v113
    %133 = vst.msk [vmem:[#allocation2 + $0x28] sm:$0xff] %vm127, %v116
    %134 = vst.msk [vmem:[#allocation2 + $0x30] sm:$0xff] %vm127, %v121
    %135 = vst.msk [vmem:[#allocation2 + $0x38] sm:$0xff] %vm127, %v124
    %v136 = vld [vmem:[%s1] sm:$0xff]
    %v137 = vld [vmem:[#allocation2] sm:$0xff]
    %v138 = vld [vmem:[%s3] sm:$0xff]
    %v139 = vld [vmem:[%s3 + $0x8] sm:$0xff]
    %v140 = vld [vmem:[%s5] sm:$0x1]
    %v142 = vlaneseq
    %v143 = vshrl.u32 %v142, 7
    %v144 = vsub.s32 0, %v143
    %v145 = vrot.slane %v140, %v144
    %vm147 = vcmask 130048
    %v149 = vsel %vm147, 0.0, 0
    %151 = vmatprep.subr.mxu0 0.0
    %152 = vmatpush1.msra.mxu0 %v138
    %153 = vmatprep.subr.mxu0 0.0
    %154 = vmatpush1.msra.mxu0 %v139
    %155 = vmatprep.subr.mxu0 0.0
    %156 = vmatpush1.msra.mxu0 0.0
    %157 = vmatprep.subr.mxu0 0.0
    %158 = vmatpush1.msra.mxu0 0.0
    %159 = vmatprep.subr.mxu0 0.0
    %160 = vmatpush1.msra.mxu0 0.0
    %161 = vmatprep.subr.mxu0 0.0
    %162 = vmatpush1.msra.mxu0 0.0
    %163 = vmatprep.subr.mxu0 0.0
    %164 = vmatpush1.msra.mxu0 0.0
    %165 = vmatprep.subr.mxu0 0.0
    %166 = vmatpush1.msra.mxu0 0.0
    %167 = vmatprep.subr.mxu0 0.0
    %168 = vmatpush1.msra.mxu0 0.0
    %169 = vmatprep.subr.mxu0 0.0
    %170 = vmatpush1.msra.mxu0 0.0
    %171 = vmatprep.subr.mxu0 0.0
    %172 = vmatpush1.msra.mxu0 0.0
    %173 = vmatprep.subr.mxu0 0.0
    %174 = vmatpush1.msra.mxu0 0.0
    %175 = vmatprep.subr.mxu0 0.0
    %176 = vmatpush1.msra.mxu0 0.0
    %177 = vmatprep.subr.mxu0 0.0
    %178 = vmatpush1.msra.mxu0 0.0
    %179 = vmatprep.subr.mxu0 0.0
    %180 = vmatpush1.msra.mxu0 0.0
    %181 = vmatprep.subr.mxu0 0.0
    %182 = vmatpush1.msra.mxu0 0.0
    %183 = vmatprep.subr.mxu0 0.0
    %184 = vmatpush1.msra.mxu0 0.0
    %185 = vmatprep.subr.mxu0 0.0
    %186 = vmatpush1.msra.mxu0 0.0
    %187 = vmatprep.subr.mxu0 0.0
    %188 = vmatpush1.msra.mxu0 0.0
    %189 = vmatprep.subr.mxu0 0.0
    %190 = vmatpush1.msra.mxu0 0.0
    %191 = vmatprep.subr.mxu0 0.0
    %192 = vmatpush1.msra.mxu0 0.0
    %193 = vmatprep.subr.mxu0 0.0
    %194 = vmatpush1.msra.mxu0 0.0
    %195 = vmatprep.subr.mxu0 0.0
    %196 = vmatpush1.msra.mxu0 0.0
    %197 = vmatprep.subr.mxu0 0.0
    %198 = vmatpush1.msra.mxu0 0.0
    %199 = vmatprep.subr.mxu0 0.0
    %200 = vmatpush1.msra.mxu0 0.0
    %201 = vmatprep.subr.mxu0 0.0
    %202 = vmatpush1.msra.mxu0 0.0
    %203 = vmatprep.subr.mxu0 0.0
    %204 = vmatpush1.msra.mxu0 0.0
    %205 = vmatprep.subr.mxu0 0.0
    %206 = vmatpush1.msra.mxu0 0.0
    %207 = vmatprep.subr.mxu0 0.0
    %208 = vmatpush1.msra.mxu0 0.0
    %209 = vmatprep.subr.mxu0 0.0
    %210 = vmatpush1.msra.mxu0 0.0
    %211 = vmatprep.subr.mxu0 0.0
    %212 = vmatpush1.msra.mxu0 0.0
    %213 = vmatprep.subr.mxu0 0.0
    %214 = vmatpush1.msra.mxu0 0.0
    %215 = vmatprep.mubr.f32.mxu0 0.0
    %216 = vmatmul.mubr.f32.gmra.mrb[0].mxu0 %v149
    %v217 = vpop.f32.mrb[0].mxu0
    %v218 = vadd.f32 %v145, %v217
    %v219 = vpop.f32.mrb[0].mxu0
    %220 = vdwg.mxu0
    %v221 = vadd.f32 %v137, %v218
    %v222 = vxor.u32 %v221, 2147483648
    %v223 = vmul.f32 %v222, 1.442695
    %v224 = vpow.pop %v223
    %v225 = vadd.f32 %v224, 1.0
    %v226 = vrcp.pop %v225
    %v227 = vmul.f32 1.0, %v226
    %229 = vrot.lane.b32.xlu0 %v218, 96
    %v230 = vpop.permute.xlu0 %229
    %v232 = vmul.f32 %v227, %v230
    %234 = vrot.lane.b32.xlu0 %v232, 32
    %v235 = vpop.permute.xlu0 %234
    %v237 = vadd.f32 %v137, %v235
    %v238 = vtanh.pop %v237
    %v239 = vsub.f32 1.0, %v227
    %241 = vrot.lane.b32.xlu0 %v238, 112
    %v242 = vpop.permute.xlu0 %241
    %v244 = vmul.f32 %v239, %v242
    %v245 = vmul.f32 %v227, 0.0
    %v246 = vadd.f32 %v244, %v245
    %vm247 = vcmp.le.f32.partialorder 1.0, %v136
    %v248 = vsel %vm247, 1, 0
    %v249 = vcvt.s32.f32 %v248
    %251 = vset.pattern.permute.xlu0 0
    %252 = vperm.xlu0 %251, %v249
    %v253 = vpop.permute.xlu0 %252
    %v255 = vmul.f32 %v253, %v246
    %v256 = vsub.f32 1.0, %v249
    %258 = vset.pattern.permute.xlu0 0
    %259 = vperm.xlu0 %258, %v256
    %v260 = vpop.permute.xlu0 %259
    %v262 = vmul.f32 %v260, 0.0
    %v263 = vadd.f32 %v255, %v262
    %s264 = scalar_lea.vmem [#allocation2], 8
    %v265 = vld [vmem:[%s264] sm:$0xff]
    %267 = vrot.lane.b32.xlu0 %v246, 112
    %v268 = vpop.permute.xlu0 %267
    %v269 = vsel %vm147, %v268, 0
    %271 = vmatprep.subr.mxu0 0.0
    %272 = vmatpush1.msra.mxu0 %v138
    %273 = vmatprep.subr.mxu0 0.0
    %274 = vmatpush1.msra.mxu0 %v139
    %275 = vmatprep.subr.mxu0 0.0
    %276 = vmatpush1.msra.mxu0 0.0
    %277 = vmatprep.subr.mxu0 0.0
    %278 = vmatpush1.msra.mxu0 0.0
    %279 = vmatprep.subr.mxu0 0.0
    %280 = vmatpush1.msra.mxu0 0.0
    %281 = vmatprep.subr.mxu0 0.0
    %282 = vmatpush1.msra.mxu0 0.0
    %283 = vmatprep.subr.mxu0 0.0
    %284 = vmatpush1.msra.mxu0 0.0
    %285 = vmatprep.subr.mxu0 0.0
    %286 = vmatpush1.msra.mxu0 0.0
    %287 = vmatprep.subr.mxu0 0.0
    %288 = vmatpush1.msra.mxu0 0.0
    %289 = vmatprep.subr.mxu0 0.0
    %290 = vmatpush1.msra.mxu0 0.0
    %291 = vmatprep.subr.mxu0 0.0
    %292 = vmatpush1.msra.mxu0 0.0
    %293 = vmatprep.subr.mxu0 0.0
    %294 = vmatpush1.msra.mxu0 0.0
    %295 = vmatprep.subr.mxu0 0.0
    %296 = vmatpush1.msra.mxu0 0.0
    %297 = vmatprep.subr.mxu0 0.0
    %298 = vmatpush1.msra.mxu0 0.0
    %299 = vmatprep.subr.mxu0 0.0
    %300 = vmatpush1.msra.mxu0 0.0
    %301 = vmatprep.subr.mxu0 0.0
    %302 = vmatpush1.msra.mxu0 0.0
    %303 = vmatprep.subr.mxu0 0.0
    %304 = vmatpush1.msra.mxu0 0.0
    %305 = vmatprep.subr.mxu0 0.0
    %306 = vmatpush1.msra.mxu0 0.0
    %307 = vmatprep.subr.mxu0 0.0
    %308 = vmatpush1.msra.mxu0 0.0
    %309 = vmatprep.subr.mxu0 0.0
    %310 = vmatpush1.msra.mxu0 0.0
    %311 = vmatprep.subr.mxu0 0.0
    %312 = vmatpush1.msra.mxu0 0.0
    %313 = vmatprep.subr.mxu0 0.0
    %314 = vmatpush1.msra.mxu0 0.0
    %315 = vmatprep.subr.mxu0 0.0
    %316 = vmatpush1.msra.mxu0 0.0
    %317 = vmatprep.subr.mxu0 0.0
    %318 = vmatpush1.msra.mxu0 0.0
    %319 = vmatprep.subr.mxu0 0.0
    %320 = vmatpush1.msra.mxu0 0.0
    %321 = vmatprep.subr.mxu0 0.0
    %322 = vmatpush1.msra.mxu0 0.0
    %323 = vmatprep.subr.mxu0 0.0
    %324 = vmatpush1.msra.mxu0 0.0
    %325 = vmatprep.subr.mxu0 0.0
    %326 = vmatpush1.msra.mxu0 0.0
    %327 = vmatprep.subr.mxu0 0.0
    %328 = vmatpush1.msra.mxu0 0.0
    %329 = vmatprep.subr.mxu0 0.0
    %330 = vmatpush1.msra.mxu0 0.0
    %331 = vmatprep.subr.mxu0 0.0
    %332 = vmatpush1.msra.mxu0 0.0
    %333 = vmatprep.subr.mxu0 0.0
    %334 = vmatpush1.msra.mxu0 0.0
    %335 = vmatprep.mubr.f32.mxu0 0.0
    %336 = vmatmul.mubr.f32.gmra.mrb[0].mxu0 %v269
    %v337 = vpop.f32.mrb[0].mxu0
    %v338 = vadd.f32 %v145, %v337
    %v339 = vpop.f32.mrb[0].mxu0
    %340 = vdwg.mxu0
    %v341 = vadd.f32 %v265, %v338
    %v342 = vxor.u32 %v341, 2147483648
    %v343 = vmul.f32 %v342, 1.442695
    %v344 = vpow.pop %v343
    %v345 = vadd.f32 %v344, 1.0
    %v346 = vrcp.pop %v345
    %v347 = vmul.f32 1.0, %v346
    %349 = vrot.lane.b32.xlu0 %v338, 96
    %v350 = vpop.permute.xlu0 %349
    %v352 = vmul.f32 %v347, %v350
    %354 = vrot.lane.b32.xlu0 %v352, 32
    %v355 = vpop.permute.xlu0 %354
    %v357 = vadd.f32 %v265, %v355
    %v358 = vtanh.pop %v357
    %v359 = vsub.f32 1.0, %v347
    %361 = vrot.lane.b32.xlu0 %v358, 112
    %v362 = vpop.permute.xlu0 %361
    %v364 = vmul.f32 %v359, %v362
    %v365 = vmul.f32 %v347, %v246
    %v366 = vadd.f32 %v364, %v365
    %vm367 = vcmp.le.f32.partialorder 2.0, %v136
    %v368 = vsel %vm367, 1, 0
    %v369 = vcvt.s32.f32 %v368
    %371 = vset.pattern.permute.xlu0 0
    %372 = vperm.xlu0 %371, %v369
    %v373 = vpop.permute.xlu0 %372
    %v375 = vmul.f32 %v373, %v366
    %v376 = vsub.f32 1.0, %v369
    %378 = vset.pattern.permute.xlu0 0
    %379 = vperm.xlu0 %378, %v376
    %v380 = vpop.permute.xlu0 %379
    %v382 = vmul.f32 %v380, %v263
    %v383 = vadd.f32 %v375, %v382
    %s384 = scalar_lea.vmem [#allocation2], 16
    %v385 = vld [vmem:[%s384] sm:$0xff]
    %387 = vrot.lane.b32.xlu0 %v366, 112
    %v388 = vpop.permute.xlu0 %387
    %v389 = vsel %vm147, %v388, 0
    %391 = vmatprep.subr.mxu0 0.0
    %392 = vmatpush1.msra.mxu0 %v138
    %393 = vmatprep.subr.mxu0 0.0
    %394 = vmatpush1.msra.mxu0 %v139
    %395 = vmatprep.subr.mxu0 0.0
    %396 = vmatpush1.msra.mxu0 0.0
    %397 = vmatprep.subr.mxu0 0.0
    %398 = vmatpush1.msra.mxu0 0.0
    %399 = vmatprep.subr.mxu0 0.0
    %400 = vmatpush1.msra.mxu0 0.0
    %401 = vmatprep.subr.mxu0 0.0
    %402 = vmatpush1.msra.mxu0 0.0
    %403 = vmatprep.subr.mxu0 0.0
    %404 = vmatpush1.msra.mxu0 0.0
    %405 = vmatprep.subr.mxu0 0.0
    %406 = vmatpush1.msra.mxu0 0.0
    %407 = vmatprep.subr.mxu0 0.0
    %408 = vmatpush1.msra.mxu0 0.0
    %409 = vmatprep.subr.mxu0 0.0
    %410 = vmatpush1.msra.mxu0 0.0
    %411 = vmatprep.subr.mxu0 0.0
    %412 = vmatpush1.msra.mxu0 0.0
    %413 = vmatprep.subr.mxu0 0.0
    %414 = vmatpush1.msra.mxu0 0.0
    %415 = vmatprep.subr.mxu0 0.0
    %416 = vmatpush1.msra.mxu0 0.0
    %417 = vmatprep.subr.mxu0 0.0
    %418 = vmatpush1.msra.mxu0 0.0
    %419 = vmatprep.subr.mxu0 0.0
    %420 = vmatpush1.msra.mxu0 0.0
    %421 = vmatprep.subr.mxu0 0.0
    %422 = vmatpush1.msra.mxu0 0.0
    %423 = vmatprep.subr.mxu0 0.0
    %424 = vmatpush1.msra.mxu0 0.0
    %425 = vmatprep.subr.mxu0 0.0
    %426 = vmatpush1.msra.mxu0 0.0
    %427 = vmatprep.subr.mxu0 0.0
    %428 = vmatpush1.msra.mxu0 0.0
    %429 = vmatprep.subr.mxu0 0.0
    %430 = vmatpush1.msra.mxu0 0.0
    %431 = vmatprep.subr.mxu0 0.0
    %432 = vmatpush1.msra.mxu0 0.0
    %433 = vmatprep.subr.mxu0 0.0
    %434 = vmatpush1.msra.mxu0 0.0
    %435 = vmatprep.subr.mxu0 0.0
    %436 = vmatpush1.msra.mxu0 0.0
    %437 = vmatprep.subr.mxu0 0.0
    %438 = vmatpush1.msra.mxu0 0.0
    %439 = vmatprep.subr.mxu0 0.0
    %440 = vmatpush1.msra.mxu0 0.0
    %441 = vmatprep.subr.mxu0 0.0
    %442 = vmatpush1.msra.mxu0 0.0
    %443 = vmatprep.subr.mxu0 0.0
    %444 = vmatpush1.msra.mxu0 0.0
    %445 = vmatprep.subr.mxu0 0.0
    %446 = vmatpush1.msra.mxu0 0.0
    %447 = vmatprep.subr.mxu0 0.0
    %448 = vmatpush1.msra.mxu0 0.0
    %449 = vmatprep.subr.mxu0 0.0
    %450 = vmatpush1.msra.mxu0 0.0
    %451 = vmatprep.subr.mxu0 0.0
    %452 = vmatpush1.msra.mxu0 0.0
    %453 = vmatprep.subr.mxu0 0.0
    %454 = vmatpush1.msra.mxu0 0.0
    %455 = vmatprep.mubr.f32.mxu0 0.0
    %456 = vmatmul.mubr.f32.gmra.mrb[0].mxu0 %v389
    %v457 = vpop.f32.mrb[0].mxu0
    %v458 = vadd.f32 %v145, %v457
    %v459 = vpop.f32.mrb[0].mxu0
    %460 = vdwg.mxu0
    %v461 = vadd.f32 %v385, %v458
    %v462 = vxor.u32 %v461, 2147483648
    %v463 = vmul.f32 %v462, 1.442695
    %v464 = vpow.pop %v463
    %v465 = vadd.f32 %v464, 1.0
    %v466 = vrcp.pop %v465
    %v467 = vmul.f32 1.0, %v466
    %469 = vrot.lane.b32.xlu0 %v458, 96
    %v470 = vpop.permute.xlu0 %469
    %v472 = vmul.f32 %v467, %v470
    %474 = vrot.lane.b32.xlu0 %v472, 32
    %v475 = vpop.permute.xlu0 %474
    %v477 = vadd.f32 %v385, %v475
    %v478 = vtanh.pop %v477
    %v479 = vsub.f32 1.0, %v467
    %481 = vrot.lane.b32.xlu0 %v478, 112
    %v482 = vpop.permute.xlu0 %481
    %v484 = vmul.f32 %v479, %v482
    %v485 = vmul.f32 %v467, %v366
    %v486 = vadd.f32 %v484, %v485
    %vm487 = vcmp.le.f32.partialorder 3.0, %v136
    %v488 = vsel %vm487, 1, 0
    %v489 = vcvt.s32.f32 %v488
    %491 = vset.pattern.permute.xlu0 0
    %492 = vperm.xlu0 %491, %v489
    %v493 = vpop.permute.xlu0 %492
    %v495 = vmul.f32 %v493, %v486
    %v496 = vsub.f32 1.0, %v489
    %498 = vset.pattern.permute.xlu0 0
    %499 = vperm.xlu0 %498, %v496
    %v500 = vpop.permute.xlu0 %499
    %v502 = vmul.f32 %v500, %v383
    %v503 = vadd.f32 %v495, %v502
    %s504 = scalar_lea.vmem [#allocation2], 24
    %v505 = vld [vmem:[%s504] sm:$0xff]
    %507 = vrot.lane.b32.xlu0 %v486, 112
    %v508 = vpop.permute.xlu0 %507
    %v509 = vsel %vm147, %v508, 0
    %511 = vmatprep.subr.mxu0 0.0
    %512 = vmatpush1.msra.mxu0 %v138
    %513 = vmatprep.subr.mxu0 0.0
    %514 = vmatpush1.msra.mxu0 %v139
    %515 = vmatprep.subr.mxu0 0.0
    %516 = vmatpush1.msra.mxu0 0.0
    %517 = vmatprep.subr.mxu0 0.0
    %518 = vmatpush1.msra.mxu0 0.0
    %519 = vmatprep.subr.mxu0 0.0
    %520 = vmatpush1.msra.mxu0 0.0
    %521 = vmatprep.subr.mxu0 0.0
    %522 = vmatpush1.msra.mxu0 0.0
    %523 = vmatprep.subr.mxu0 0.0
    %524 = vmatpush1.msra.mxu0 0.0
    %525 = vmatprep.subr.mxu0 0.0
    %526 = vmatpush1.msra.mxu0 0.0
    %527 = vmatprep.subr.mxu0 0.0
    %528 = vmatpush1.msra.mxu0 0.0
    %529 = vmatprep.subr.mxu0 0.0
    %530 = vmatpush1.msra.mxu0 0.0
    %531 = vmatprep.subr.mxu0 0.0
    %532 = vmatpush1.msra.mxu0 0.0
    %533 = vmatprep.subr.mxu0 0.0
    %534 = vmatpush1.msra.mxu0 0.0
    %535 = vmatprep.subr.mxu0 0.0
    %536 = vmatpush1.msra.mxu0 0.0
    %537 = vmatprep.subr.mxu0 0.0
    %538 = vmatpush1.msra.mxu0 0.0
    %539 = vmatprep.subr.mxu0 0.0
    %540 = vmatpush1.msra.mxu0 0.0
    %541 = vmatprep.subr.mxu0 0.0
    %542 = vmatpush1.msra.mxu0 0.0
    %543 = vmatprep.subr.mxu0 0.0
    %544 = vmatpush1.msra.mxu0 0.0
    %545 = vmatprep.subr.mxu0 0.0
    %546 = vmatpush1.msra.mxu0 0.0
    %547 = vmatprep.subr.mxu0 0.0
    %548 = vmatpush1.msra.mxu0 0.0
    %549 = vmatprep.subr.mxu0 0.0
    %550 = vmatpush1.msra.mxu0 0.0
    %551 = vmatprep.subr.mxu0 0.0
    %552 = vmatpush1.msra.mxu0 0.0
    %553 = vmatprep.subr.mxu0 0.0
    %554 = vmatpush1.msra.mxu0 0.0
    %555 = vmatprep.subr.mxu0 0.0
    %556 = vmatpush1.msra.mxu0 0.0
    %557 = vmatprep.subr.mxu0 0.0
    %558 = vmatpush1.msra.mxu0 0.0
    %559 = vmatprep.subr.mxu0 0.0
    %560 = vmatpush1.msra.mxu0 0.0
    %561 = vmatprep.subr.mxu0 0.0
    %562 = vmatpush1.msra.mxu0 0.0
    %563 = vmatprep.subr.mxu0 0.0
    %564 = vmatpush1.msra.mxu0 0.0
    %565 = vmatprep.subr.mxu0 0.0
    %566 = vmatpush1.msra.mxu0 0.0
    %567 = vmatprep.subr.mxu0 0.0
    %568 = vmatpush1.msra.mxu0 0.0
    %569 = vmatprep.subr.mxu0 0.0
    %570 = vmatpush1.msra.mxu0 0.0
    %571 = vmatprep.subr.mxu0 0.0
    %572 = vmatpush1.msra.mxu0 0.0
    %573 = vmatprep.subr.mxu0 0.0
    %574 = vmatpush1.msra.mxu0 0.0
    %575 = vmatprep.mubr.f32.mxu0 0.0
    %576 = vmatmul.mubr.f32.gmra.mrb[0].mxu0 %v509
    %v577 = vpop.f32.mrb[0].mxu0
    %v578 = vadd.f32 %v145, %v577
    %v579 = vpop.f32.mrb[0].mxu0
    %580 = vdwg.mxu0
    %v581 = vadd.f32 %v505, %v578
    %v582 = vxor.u32 %v581, 2147483648
    %v583 = vmul.f32 %v582, 1.442695
    %v584 = vpow.pop %v583
    %v585 = vadd.f32 %v584, 1.0
    %v586 = vrcp.pop %v585
    %v587 = vmul.f32 1.0, %v586
    %589 = vrot.lane.b32.xlu0 %v578, 96
    %v590 = vpop.permute.xlu0 %589
    %v592 = vmul.f32 %v587, %v590
    %594 = vrot.lane.b32.xlu0 %v592, 32
    %v595 = vpop.permute.xlu0 %594
    %v597 = vadd.f32 %v505, %v595
    %v598 = vtanh.pop %v597
    %v599 = vsub.f32 1.0, %v587
    %601 = vrot.lane.b32.xlu0 %v598, 112
    %v602 = vpop.permute.xlu0 %601
    %v604 = vmul.f32 %v599, %v602
    %v605 = vmul.f32 %v587, %v486
    %v606 = vadd.f32 %v604, %v605
    %vm607 = vcmp.le.f32.partialorder 4.0, %v136
    %v608 = vsel %vm607, 1, 0
    %v609 = vcvt.s32.f32 %v608
    %611 = vset.pattern.permute.xlu0 0
    %612 = vperm.xlu0 %611, %v609
    %v613 = vpop.permute.xlu0 %612
    %v615 = vmul.f32 %v613, %v606
    %v616 = vsub.f32 1.0, %v609
    %618 = vset.pattern.permute.xlu0 0
    %619 = vperm.xlu0 %618, %v616
    %v620 = vpop.permute.xlu0 %619
    %v622 = vmul.f32 %v620, %v503
    %v623 = vadd.f32 %v615, %v622
    %s624 = scalar_lea.vmem [#allocation2], 32
    %v625 = vld [vmem:[%s624] sm:$0xff]
    %627 = vrot.lane.b32.xlu0 %v606, 112
    %v628 = vpop.permute.xlu0 %627
    %v629 = vsel %vm147, %v628, 0
    %631 = vmatprep.subr.mxu0 0.0
    %632 = vmatpush1.msra.mxu0 %v138
    %633 = vmatprep.subr.mxu0 0.0
    %634 = vmatpush1.msra.mxu0 %v139
    %635 = vmatprep.subr.mxu0 0.0
    %636 = vmatpush1.msra.mxu0 0.0
    %637 = vmatprep.subr.mxu0 0.0
    %638 = vmatpush1.msra.mxu0 0.0
    %639 = vmatprep.subr.mxu0 0.0
    %640 = vmatpush1.msra.mxu0 0.0
    %641 = vmatprep.subr.mxu0 0.0
    %642 = vmatpush1.msra.mxu0 0.0
    %643 = vmatprep.subr.mxu0 0.0
    %644 = vmatpush1.msra.mxu0 0.0
    %645 = vmatprep.subr.mxu0 0.0
    %646 = vmatpush1.msra.mxu0 0.0
    %647 = vmatprep.subr.mxu0 0.0
    %648 = vmatpush1.msra.mxu0 0.0
    %649 = vmatprep.subr.mxu0 0.0
    %650 = vmatpush1.msra.mxu0 0.0
    %651 = vmatprep.subr.mxu0 0.0
    %652 = vmatpush1.msra.mxu0 0.0
    %653 = vmatprep.subr.mxu0 0.0
    %654 = vmatpush1.msra.mxu0 0.0
    %655 = vmatprep.subr.mxu0 0.0
    %656 = vmatpush1.msra.mxu0 0.0
    %657 = vmatprep.subr.mxu0 0.0
    %658 = vmatpush1.msra.mxu0 0.0
    %659 = vmatprep.subr.mxu0 0.0
    %660 = vmatpush1.msra.mxu0 0.0
    %661 = vmatprep.subr.mxu0 0.0
    %662 = vmatpush1.msra.mxu0 0.0
    %663 = vmatprep.subr.mxu0 0.0
    %664 = vmatpush1.msra.mxu0 0.0
    %665 = vmatprep.subr.mxu0 0.0
    %666 = vmatpush1.msra.mxu0 0.0
    %667 = vmatprep.subr.mxu0 0.0
    %668 = vmatpush1.msra.mxu0 0.0
    %669 = vmatprep.subr.mxu0 0.0
    %670 = vmatpush1.msra.mxu0 0.0
    %671 = vmatprep.subr.mxu0 0.0
    %672 = vmatpush1.msra.mxu0 0.0
    %673 = vmatprep.subr.mxu0 0.0
    %674 = vmatpush1.msra.mxu0 0.0
    %675 = vmatprep.subr.mxu0 0.0
    %676 = vmatpush1.msra.mxu0 0.0
    %677 = vmatprep.subr.mxu0 0.0
    %678 = vmatpush1.msra.mxu0 0.0
    %679 = vmatprep.subr.mxu0 0.0
    %680 = vmatpush1.msra.mxu0 0.0
    %681 = vmatprep.subr.mxu0 0.0
    %682 = vmatpush1.msra.mxu0 0.0
    %683 = vmatprep.subr.mxu0 0.0
    %684 = vmatpush1.msra.mxu0 0.0
    %685 = vmatprep.subr.mxu0 0.0
    %686 = vmatpush1.msra.mxu0 0.0
    %687 = vmatprep.subr.mxu0 0.0
    %688 = vmatpush1.msra.mxu0 0.0
    %689 = vmatprep.subr.mxu0 0.0
    %690 = vmatpush1.msra.mxu0 0.0
    %691 = vmatprep.subr.mxu0 0.0
    %692 = vmatpush1.msra.mxu0 0.0
    %693 = vmatprep.subr.mxu0 0.0
    %694 = vmatpush1.msra.mxu0 0.0
    %695 = vmatprep.mubr.f32.mxu0 0.0
    %696 = vmatmul.mubr.f32.gmra.mrb[0].mxu0 %v629
    %v697 = vpop.f32.mrb[0].mxu0
    %v698 = vadd.f32 %v145, %v697
    %v699 = vpop.f32.mrb[0].mxu0
    %700 = vdwg.mxu0
    %v701 = vadd.f32 %v625, %v698
    %v702 = vxor.u32 %v701, 2147483648
    %v703 = vmul.f32 %v702, 1.442695
    %v704 = vpow.pop %v703
    %v705 = vadd.f32 %v704, 1.0
    %v706 = vrcp.pop %v705
    %v707 = vmul.f32 1.0, %v706
    %709 = vrot.lane.b32.xlu0 %v698, 96
    %v710 = vpop.permute.xlu0 %709
    %v712 = vmul.f32 %v707, %v710
    %714 = vrot.lane.b32.xlu0 %v712, 32
    %v715 = vpop.permute.xlu0 %714
    %v717 = vadd.f32 %v625, %v715
    %v718 = vtanh.pop %v717
    %v719 = vsub.f32 1.0, %v707
    %721 = vrot.lane.b32.xlu0 %v718, 112
    %v722 = vpop.permute.xlu0 %721
    %v724 = vmul.f32 %v719, %v722
    %v725 = vmul.f32 %v707, %v606
    %v726 = vadd.f32 %v724, %v725
    %vm727 = vcmp.le.f32.partialorder 5.0, %v136
    %v728 = vsel %vm727, 1, 0
    %v729 = vcvt.s32.f32 %v728
    %731 = vset.pattern.permute.xlu0 0
    %732 = vperm.xlu0 %731, %v729
    %v733 = vpop.permute.xlu0 %732
    %v735 = vmul.f32 %v733, %v726
    %v736 = vsub.f32 1.0, %v729
    %738 = vset.pattern.permute.xlu0 0
    %739 = vperm.xlu0 %738, %v736
    %v740 = vpop.permute.xlu0 %739
    %v742 = vmul.f32 %v740, %v623
    %v743 = vadd.f32 %v735, %v742
    %s744 = scalar_lea.vmem [#allocation2], 40
    %v745 = vld [vmem:[%s744] sm:$0xff]
    %747 = vrot.lane.b32.xlu0 %v726, 112
    %v748 = vpop.permute.xlu0 %747
    %v749 = vsel %vm147, %v748, 0
    %751 = vmatprep.subr.mxu0 0.0
    %752 = vmatpush1.msra.mxu0 %v138
    %753 = vmatprep.subr.mxu0 0.0
    %754 = vmatpush1.msra.mxu0 %v139
    %755 = vmatprep.subr.mxu0 0.0
    %756 = vmatpush1.msra.mxu0 0.0
    %757 = vmatprep.subr.mxu0 0.0
    %758 = vmatpush1.msra.mxu0 0.0
    %759 = vmatprep.subr.mxu0 0.0
    %760 = vmatpush1.msra.mxu0 0.0
    %761 = vmatprep.subr.mxu0 0.0
    %762 = vmatpush1.msra.mxu0 0.0
    %763 = vmatprep.subr.mxu0 0.0
    %764 = vmatpush1.msra.mxu0 0.0
    %765 = vmatprep.subr.mxu0 0.0
    %766 = vmatpush1.msra.mxu0 0.0
    %767 = vmatprep.subr.mxu0 0.0
    %768 = vmatpush1.msra.mxu0 0.0
    %769 = vmatprep.subr.mxu0 0.0
    %770 = vmatpush1.msra.mxu0 0.0
    %771 = vmatprep.subr.mxu0 0.0
    %772 = vmatpush1.msra.mxu0 0.0
    %773 = vmatprep.subr.mxu0 0.0
    %774 = vmatpush1.msra.mxu0 0.0
    %775 = vmatprep.subr.mxu0 0.0
    %776 = vmatpush1.msra.mxu0 0.0
    %777 = vmatprep.subr.mxu0 0.0
    %778 = vmatpush1.msra.mxu0 0.0
    %779 = vmatprep.subr.mxu0 0.0
    %780 = vmatpush1.msra.mxu0 0.0
    %781 = vmatprep.subr.mxu0 0.0
    %782 = vmatpush1.msra.mxu0 0.0
    %783 = vmatprep.subr.mxu0 0.0
    %784 = vmatpush1.msra.mxu0 0.0
    %785 = vmatprep.subr.mxu0 0.0
    %786 = vmatpush1.msra.mxu0 0.0
    %787 = vmatprep.subr.mxu0 0.0
    %788 = vmatpush1.msra.mxu0 0.0
    %789 = vmatprep.subr.mxu0 0.0
    %790 = vmatpush1.msra.mxu0 0.0
    %791 = vmatprep.subr.mxu0 0.0
    %792 = vmatpush1.msra.mxu0 0.0
    %793 = vmatprep.subr.mxu0 0.0
    %794 = vmatpush1.msra.mxu0 0.0
    %795 = vmatprep.subr.mxu0 0.0
    %796 = vmatpush1.msra.mxu0 0.0
    %797 = vmatprep.subr.mxu0 0.0
    %798 = vmatpush1.msra.mxu0 0.0
    %799 = vmatprep.subr.mxu0 0.0
    %800 = vmatpush1.msra.mxu0 0.0
    %801 = vmatprep.subr.mxu0 0.0
    %802 = vmatpush1.msra.mxu0 0.0
    %803 = vmatprep.subr.mxu0 0.0
    %804 = vmatpush1.msra.mxu0 0.0
    %805 = vmatprep.subr.mxu0 0.0
    %806 = vmatpush1.msra.mxu0 0.0
    %807 = vmatprep.subr.mxu0 0.0
    %808 = vmatpush1.msra.mxu0 0.0
    %809 = vmatprep.subr.mxu0 0.0
    %810 = vmatpush1.msra.mxu0 0.0
    %811 = vmatprep.subr.mxu0 0.0
    %812 = vmatpush1.msra.mxu0 0.0
    %813 = vmatprep.subr.mxu0 0.0
    %814 = vmatpush1.msra.mxu0 0.0
    %815 = vmatprep.mubr.f32.mxu0 0.0
    %816 = vmatmul.mubr.f32.gmra.mrb[0].mxu0 %v749
    %v817 = vpop.f32.mrb[0].mxu0
    %v818 = vadd.f32 %v145, %v817
    %v819 = vpop.f32.mrb[0].mxu0
    %820 = vdwg.mxu0
    %v821 = vadd.f32 %v745, %v818
    %v822 = vxor.u32 %v821, 2147483648
    %v823 = vmul.f32 %v822, 1.442695
    %v824 = vpow.pop %v823
    %v825 = vadd.f32 %v824, 1.0
    %v826 = vrcp.pop %v825
    %v827 = vmul.f32 1.0, %v826
    %829 = vrot.lane.b32.xlu0 %v818, 96
    %v830 = vpop.permute.xlu0 %829
    %v832 = vmul.f32 %v827, %v830
    %834 = vrot.lane.b32.xlu0 %v832, 32
    %v835 = vpop.permute.xlu0 %834
    %v837 = vadd.f32 %v745, %v835
    %v838 = vtanh.pop %v837
    %v839 = vsub.f32 1.0, %v827
    %841 = vrot.lane.b32.xlu0 %v838, 112
    %v842 = vpop.permute.xlu0 %841
    %v844 = vmul.f32 %v839, %v842
    %v845 = vmul.f32 %v827, %v726
    %v846 = vadd.f32 %v844, %v845
    %vm847 = vcmp.le.f32.partialorder 6.0, %v136
    %v848 = vsel %vm847, 1, 0
    %v849 = vcvt.s32.f32 %v848
    %851 = vset.pattern.permute.xlu0 0
    %852 = vperm.xlu0 %851, %v849
    %v853 = vpop.permute.xlu0 %852
    %v855 = vmul.f32 %v853, %v846
    %v856 = vsub.f32 1.0, %v849
    %858 = vset.pattern.permute.xlu0 0
    %859 = vperm.xlu0 %858, %v856
    %v860 = vpop.permute.xlu0 %859
    %v862 = vmul.f32 %v860, %v743
    %v863 = vadd.f32 %v855, %v862
    %s864 = scalar_lea.vmem [#allocation2], 48
    %v865 = vld [vmem:[%s864] sm:$0xff]
    %867 = vrot.lane.b32.xlu0 %v846, 112
    %v868 = vpop.permute.xlu0 %867
    %v869 = vsel %vm147, %v868, 0
    %871 = vmatprep.subr.mxu0 0.0
    %872 = vmatpush1.msra.mxu0 %v138
    %873 = vmatprep.subr.mxu0 0.0
    %874 = vmatpush1.msra.mxu0 %v139
    %875 = vmatprep.subr.mxu0 0.0
    %876 = vmatpush1.msra.mxu0 0.0
    %877 = vmatprep.subr.mxu0 0.0
    %878 = vmatpush1.msra.mxu0 0.0
    %879 = vmatprep.subr.mxu0 0.0
    %880 = vmatpush1.msra.mxu0 0.0
    %881 = vmatprep.subr.mxu0 0.0
    %882 = vmatpush1.msra.mxu0 0.0
    %883 = vmatprep.subr.mxu0 0.0
    %884 = vmatpush1.msra.mxu0 0.0
    %885 = vmatprep.subr.mxu0 0.0
    %886 = vmatpush1.msra.mxu0 0.0
    %887 = vmatprep.subr.mxu0 0.0
    %888 = vmatpush1.msra.mxu0 0.0
    %889 = vmatprep.subr.mxu0 0.0
    %890 = vmatpush1.msra.mxu0 0.0
    %891 = vmatprep.subr.mxu0 0.0
    %892 = vmatpush1.msra.mxu0 0.0
    %893 = vmatprep.subr.mxu0 0.0
    %894 = vmatpush1.msra.mxu0 0.0
    %895 = vmatprep.subr.mxu0 0.0
    %896 = vmatpush1.msra.mxu0 0.0
    %897 = vmatprep.subr.mxu0 0.0
    %898 = vmatpush1.msra.mxu0 0.0
    %899 = vmatprep.subr.mxu0 0.0
    %900 = vmatpush1.msra.mxu0 0.0
    %901 = vmatprep.subr.mxu0 0.0
    %902 = vmatpush1.msra.mxu0 0.0
    %903 = vmatprep.subr.mxu0 0.0
    %904 = vmatpush1.msra.mxu0 0.0
    %905 = vmatprep.subr.mxu0 0.0
    %906 = vmatpush1.msra.mxu0 0.0
    %907 = vmatprep.subr.mxu0 0.0
    %908 = vmatpush1.msra.mxu0 0.0
    %909 = vmatprep.subr.mxu0 0.0
    %910 = vmatpush1.msra.mxu0 0.0
    %911 = vmatprep.subr.mxu0 0.0
    %912 = vmatpush1.msra.mxu0 0.0
    %913 = vmatprep.subr.mxu0 0.0
    %914 = vmatpush1.msra.mxu0 0.0
    %915 = vmatprep.subr.mxu0 0.0
    %916 = vmatpush1.msra.mxu0 0.0
    %917 = vmatprep.subr.mxu0 0.0
    %918 = vmatpush1.msra.mxu0 0.0
    %919 = vmatprep.subr.mxu0 0.0
    %920 = vmatpush1.msra.mxu0 0.0
    %921 = vmatprep.subr.mxu0 0.0
    %922 = vmatpush1.msra.mxu0 0.0
    %923 = vmatprep.subr.mxu0 0.0
    %924 = vmatpush1.msra.mxu0 0.0
    %925 = vmatprep.subr.mxu0 0.0
    %926 = vmatpush1.msra.mxu0 0.0
    %927 = vmatprep.subr.mxu0 0.0
    %928 = vmatpush1.msra.mxu0 0.0
    %929 = vmatprep.subr.mxu0 0.0
    %930 = vmatpush1.msra.mxu0 0.0
    %931 = vmatprep.subr.mxu0 0.0
    %932 = vmatpush1.msra.mxu0 0.0
    %933 = vmatprep.subr.mxu0 0.0
    %934 = vmatpush1.msra.mxu0 0.0
    %935 = vmatprep.mubr.f32.mxu0 0.0
    %936 = vmatmul.mubr.f32.gmra.mrb[0].mxu0 %v869
    %v937 = vpop.f32.mrb[0].mxu0
    %v938 = vadd.f32 %v145, %v937
    %v939 = vpop.f32.mrb[0].mxu0
    %940 = vdwg.mxu0
    %v941 = vadd.f32 %v865, %v938
    %v942 = vxor.u32 %v941, 2147483648
    %v943 = vmul.f32 %v942, 1.442695
    %v944 = vpow.pop %v943
    %v945 = vadd.f32 %v944, 1.0
    %v946 = vrcp.pop %v945
    %v947 = vmul.f32 1.0, %v946
    %949 = vrot.lane.b32.xlu0 %v938, 96
    %v950 = vpop.permute.xlu0 %949
    %v952 = vmul.f32 %v947, %v950
    %954 = vrot.lane.b32.xlu0 %v952, 32
    %v955 = vpop.permute.xlu0 %954
    %v957 = vadd.f32 %v865, %v955
    %v958 = vtanh.pop %v957
    %v959 = vsub.f32 1.0, %v947
    %961 = vrot.lane.b32.xlu0 %v958, 112
    %v962 = vpop.permute.xlu0 %961
    %v964 = vmul.f32 %v959, %v962
    %v965 = vmul.f32 %v947, %v846
    %v966 = vadd.f32 %v964, %v965
    %vm967 = vcmp.le.f32.partialorder 7.0, %v136
    %v968 = vsel %vm967, 1, 0
    %v969 = vcvt.s32.f32 %v968
    %971 = vset.pattern.permute.xlu0 0
    %972 = vperm.xlu0 %971, %v969
    %v973 = vpop.permute.xlu0 %972
    %v975 = vmul.f32 %v973, %v966
    %v976 = vsub.f32 1.0, %v969
    %978 = vset.pattern.permute.xlu0 0
    %979 = vperm.xlu0 %978, %v976
    %v980 = vpop.permute.xlu0 %979
    %v982 = vmul.f32 %v980, %v863
    %v983 = vadd.f32 %v975, %v982
    %s984 = scalar_lea.vmem [#allocation2], 56
    %v985 = vld [vmem:[%s984] sm:$0xff]
    %987 = vrot.lane.b32.xlu0 %v966, 112
    %v988 = vpop.permute.xlu0 %987
    %v989 = vsel %vm147, %v988, 0
    %991 = vmatprep.subr.mxu0 0.0
    %992 = vmatpush1.msra.mxu0 %v138
    %993 = vmatprep.subr.mxu0 0.0
    %994 = vmatpush1.msra.mxu0 %v139
    %995 = vmatprep.subr.mxu0 0.0
    %996 = vmatpush1.msra.mxu0 0.0
    %997 = vmatprep.subr.mxu0 0.0
    %998 = vmatpush1.msra.mxu0 0.0
    %999 = vmatprep.subr.mxu0 0.0
    %1000 = vmatpush1.msra.mxu0 0.0
    %1001 = vmatprep.subr.mxu0 0.0
    %1002 = vmatpush1.msra.mxu0 0.0
    %1003 = vmatprep.subr.mxu0 0.0
    %1004 = vmatpush1.msra.mxu0 0.0
    %1005 = vmatprep.subr.mxu0 0.0
    %1006 = vmatpush1.msra.mxu0 0.0
    %1007 = vmatprep.subr.mxu0 0.0
    %1008 = vmatpush1.msra.mxu0 0.0
    %1009 = vmatprep.subr.mxu0 0.0
    %1010 = vmatpush1.msra.mxu0 0.0
    %1011 = vmatprep.subr.mxu0 0.0
    %1012 = vmatpush1.msra.mxu0 0.0
    %1013 = vmatprep.subr.mxu0 0.0
    %1014 = vmatpush1.msra.mxu0 0.0
    %1015 = vmatprep.subr.mxu0 0.0
    %1016 = vmatpush1.msra.mxu0 0.0
    %1017 = vmatprep.subr.mxu0 0.0
    %1018 = vmatpush1.msra.mxu0 0.0
    %1019 = vmatprep.subr.mxu0 0.0
    %1020 = vmatpush1.msra.mxu0 0.0
    %1021 = vmatprep.subr.mxu0 0.0
    %1022 = vmatpush1.msra.mxu0 0.0
    %1023 = vmatprep.subr.mxu0 0.0
    %1024 = vmatpush1.msra.mxu0 0.0
    %1025 = vmatprep.subr.mxu0 0.0
    %1026 = vmatpush1.msra.mxu0 0.0
    %1027 = vmatprep.subr.mxu0 0.0
    %1028 = vmatpush1.msra.mxu0 0.0
    %1029 = vmatprep.subr.mxu0 0.0
    %1030 = vmatpush1.msra.mxu0 0.0
    %1031 = vmatprep.subr.mxu0 0.0
    %1032 = vmatpush1.msra.mxu0 0.0
    %1033 = vmatprep.subr.mxu0 0.0
    %1034 = vmatpush1.msra.mxu0 0.0
    %1035 = vmatprep.subr.mxu0 0.0
    %1036 = vmatpush1.msra.mxu0 0.0
    %1037 = vmatprep.subr.mxu0 0.0
    %1038 = vmatpush1.msra.mxu0 0.0
    %1039 = vmatprep.subr.mxu0 0.0
    %1040 = vmatpush1.msra.mxu0 0.0
    %1041 = vmatprep.subr.mxu0 0.0
    %1042 = vmatpush1.msra.mxu0 0.0
    %1043 = vmatprep.subr.mxu0 0.0
    %1044 = vmatpush1.msra.mxu0 0.0
    %1045 = vmatprep.subr.mxu0 0.0
    %1046 = vmatpush1.msra.mxu0 0.0
    %1047 = vmatprep.subr.mxu0 0.0
    %1048 = vmatpush1.msra.mxu0 0.0
    %1049 = vmatprep.subr.mxu0 0.0
    %1050 = vmatpush1.msra.mxu0 0.0
    %1051 = vmatprep.subr.mxu0 0.0
    %1052 = vmatpush1.msra.mxu0 0.0
    %1053 = vmatprep.subr.mxu0 0.0
    %1054 = vmatpush1.msra.mxu0 0.0
    %1055 = vmatprep.mubr.f32.mxu0 0.0
    %1056 = vmatmul.mubr.f32.gmra.mrb[0].mxu0 %v989
    %v1057 = vpop.f32.mrb[0].mxu0
    %v1058 = vadd.f32 %v145, %v1057
    %v1059 = vpop.f32.mrb[0].mxu0
    %1060 = vdwg.mxu0
    %v1061 = vadd.f32 %v985, %v1058
    %v1062 = vxor.u32 %v1061, 2147483648
    %v1063 = vmul.f32 %v1062, 1.442695
    %v1064 = vpow.pop %v1063
    %v1065 = vadd.f32 %v1064, 1.0
    %v1066 = vrcp.pop %v1065
    %v1067 = vmul.f32 1.0, %v1066
    %1069 = vrot.lane.b32.xlu0 %v1058, 96
    %v1070 = vpop.permute.xlu0 %1069
    %v1072 = vmul.f32 %v1067, %v1070
    %1074 = vrot.lane.b32.xlu0 %v1072, 32
    %v1075 = vpop.permute.xlu0 %1074
    %v1077 = vadd.f32 %v985, %v1075
    %v1078 = vtanh.pop %v1077
    %v1079 = vsub.f32 1.0, %v1067
    %1081 = vrot.lane.b32.xlu0 %v1078, 112
    %v1082 = vpop.permute.xlu0 %1081
    %v1084 = vmul.f32 %v1079, %v1082
    %v1085 = vmul.f32 %v1067, %v966
    %v1086 = vadd.f32 %v1084, %v1085
    %vm1087 = vcmp.le.f32.partialorder 8.0, %v136
    %v1088 = vsel %vm1087, 1, 0
    %v1089 = vcvt.s32.f32 %v1088
    %1091 = vset.pattern.permute.xlu0 0
    %1092 = vperm.xlu0 %1091, %v1089
    %v1093 = vpop.permute.xlu0 %1092
    %v1095 = vmul.f32 %v1093, %v1086
    %v1096 = vsub.f32 1.0, %v1089
    %1098 = vset.pattern.permute.xlu0 0
    %1099 = vperm.xlu0 %1098, %v1096
    %v1100 = vpop.permute.xlu0 %1099
    %v1102 = vmul.f32 %v1100, %v983
    %v1103 = vadd.f32 %v1095, %v1102
    %1105 = vrot.lane.b32.xlu0 %v1103, 112
    %v1106 = vpop.permute.xlu0 %1105
    %1108 = vst.msk [vmem:[#allocation3] sm:$0xff] %vm147, %v1106
    // Predicated region
    $region26: #{tpu_custom_call.1} parent=1 // pred_check
      _
    $region27: #{tpu_custom_call.1} parent=1 // pred_check_branch
      %1110 = sbr.rel (0) target = $region29
    $region28: #{tpu_custom_call.1} parent=1 // pred_region
      %s1112 = ssub.s32 128, 128
      %1113 = vsyncadd [#allocation4], %s1112
      %s1115 = sshll.u32 [#allocation3], 4
      %s1116 = int_to_ptr.vmem [resolvable:$true] %s1115
      %1118 = dma.vmem_to_hbm [thread:$0]  %s1116, 128, %s6, [#allocation4]
    $region29: #{tpu_custom_call.1} parent=1 // pred_fallthru
      _
    // Predicated region
    $region30: #{tpu_custom_call.1} parent=1 // pred_check
      _
    $region31: #{tpu_custom_call.1} parent=1 // pred_check_branch
      %1120 = sbr.rel (0) target = $region33
    $region32: #{tpu_custom_call.1} parent=1 // pred_region
      %1121 = dma.done [#allocation4], 128
    $region33: #{tpu_custom_call.1} parent=1 // pred_fallthru
      _
    %1122 = vsyncpa [#allocation4], 1

</llo_original>
